<compile_context>
chip_gen: v5e
topology: v5e:2x2
jax: 0.10.0
libtpu: 0.0.40
codegen_flags: <defaults>
</compile_context>

<pallas_src>
import functools

import jax
import jax.numpy as jnp
from jax.experimental import pallas as pl
from jax.experimental.pallas import tpu as pltpu


# ----------------------------------------------------------------------------
# Tile pickers
# ----------------------------------------------------------------------------
def _pick_m_tile(b):
    """Largest power-of-two row tile (<=256) that divides b, else full b."""
    for c in (256, 128, 64, 32, 16, 8):
        if b % c == 0:
            return c
    return b


def _pick_k_tile(k, cap=2048):
    """Largest multiple of 128 that divides k, capped (keeps big streamed
    blocks so per-grid-step overhead is amortized on v6e/v7x)."""
    best = None
    d = 128
    while d <= min(k, cap):
        if k % d == 0:
            best = d
        d += 128
    return best if best is not None else k


def _resident(shape, grid_ndim):
    """BlockSpec for a weight/bias whose block index never changes: constant
    index map + single buffering (no wasted 2nd VMEM copy)."""
    if grid_ndim == 1:
        idx = lambda i: (0, 0)
    else:
        idx = lambda i, k: (0, 0)
    return pl.BlockSpec(shape, idx, pipeline_mode=pl.Buffered(1))


# ----------------------------------------------------------------------------
# Kernel 1: fused 3-layer branch  out = tanh(tanh(tanh(x@W1+b1)@W2+b2)@W3+b3)
#   grid = (batch tiles "parallel", K tiles of layer 1 "arbitrary")
# ----------------------------------------------------------------------------
def _branch_kernel(x_ref, w1_ref, b1_ref, w2_ref, b2_ref, w3_ref, b3_ref,
                   o_ref, acc_ref):
    k = pl.program_id(1)

    # bf16 x bf16 -> f32 accumulate on the MXU.
    part = jnp.dot(x_ref[...].astype(w1_ref.dtype), w1_ref[...],
                   preferred_element_type=jnp.float32)

    @pl.when(k == 0)
    def _():
        # Seed with bias (no zero-fill pass, no separate bias add).
        acc_ref[...] = part + b1_ref[...]

    @pl.when(k > 0)
    def _():
        acc_ref[...] += part

    @pl.when(k == pl.num_programs(1) - 1)
    def _():
        h = jnp.tanh(acc_ref[...])
        h = jnp.tanh(
            jnp.dot(h.astype(w2_ref.dtype), w2_ref[...],
                    preferred_element_type=jnp.float32) + b2_ref[...])
        h = jnp.tanh(
            jnp.dot(h.astype(w3_ref.dtype), w3_ref[...],
                    preferred_element_type=jnp.float32) + b3_ref[...])
        o_ref[...] = h.astype(o_ref.dtype)   # bf16 writeback


def branch_forward(x, layer1, layer2, layer3):
    """x: (B, K).  layers: (W (in,out) bf16, b (1,out) f32).  Returns (B,H) bf16."""
    B, K = x.shape
    w1, b1 = layer1
    w2, b2 = layer2
    w3, b3 = layer3
    H = w1.shape[1]

    tm = _pick_m_tile(B)
    tk = _pick_k_tile(K)
    nm, nk = B // tm, K // tk

    grid_spec = pltpu.PrefetchScalarGridSpec(
        num_scalar_prefetch=0,
        grid=(nm, nk),
        in_specs=[
            pl.BlockSpec((tm, tk), lambda i, k: (i, k)),   # x (streamed)
            pl.BlockSpec((tk, H), lambda i, k: (k, 0)),    # W1 (streamed over K)
            _resident((1, H), 2),                          # b1
            _resident((H, H), 2),                          # W2 (single-buffered)
            _resident((1, H), 2),                          # b2
            _resident((H, H), 2),                          # W3 (single-buffered)
            _resident((1, H), 2),                          # b3
        ],
        out_specs=pl.BlockSpec((tm, H), lambda i, k: (i, 0)),
        scratch_shapes=[pltpu.VMEM((tm, H), jnp.float32)],
    )
    return pl.pallas_call(
        _branch_kernel,
        out_shape=jax.ShapeDtypeStruct((B, H), jnp.bfloat16),
        grid_spec=grid_spec,
        compiler_params=pltpu.CompilerParams(
            dimension_semantics=("parallel", "arbitrary"),
            vmem_limit_bytes=32 * 1024 * 1024),
    )(x, w1, b1, w2, b2, w3, b3)


# ----------------------------------------------------------------------------
# Kernel 2: fused tail on the two views (no concat):
#   feat_v = view_v @ Wl + bl                 (shared linearLayer)
#   pred_v = feat_v @ W2p + b2p               (classifier, lane-padded to 128)
#   stu_img = relu(feat_1 @ Wi + bi)
#   stu_txt = relu(feat_2 @ Wt + bt)
#   grid = (batch row tiles "parallel"); shared weights resident, single-buffered.
# ----------------------------------------------------------------------------
def _tail_kernel(v1_ref, v2_ref, wl_ref, bl_ref, w2_ref, b2_ref,
                 wi_ref, bi_ref, wt_ref, bt_ref,
                 f1_ref, f2_ref, p1_ref, p2_ref, si_ref, st_ref):
    f1 = jnp.dot(v1_ref[...], wl_ref[...],
                 preferred_element_type=jnp.float32) + bl_ref[...]
    f2 = jnp.dot(v2_ref[...], wl_ref[...],
                 preferred_element_type=jnp.float32) + bl_ref[...]
    f1_ref[...] = f1.astype(f1_ref.dtype)
    f2_ref[...] = f2.astype(f2_ref.dtype)

    f1b = f1.astype(w2_ref.dtype)
    f2b = f2.astype(w2_ref.dtype)

    p1_ref[...] = (jnp.dot(f1b, w2_ref[...], preferred_element_type=jnp.float32)
                   + b2_ref[...]).astype(p1_ref.dtype)
    p2_ref[...] = (jnp.dot(f2b, w2_ref[...], preferred_element_type=jnp.float32)
                   + b2_ref[...]).astype(p2_ref.dtype)

    si = jnp.dot(f1b, wi_ref[...], preferred_element_type=jnp.float32) + bi_ref[...]
    si_ref[...] = jnp.maximum(si, 0.0).astype(si_ref.dtype)

    st = jnp.dot(f2b, wt_ref[...], preferred_element_type=jnp.float32) + bt_ref[...]
    st_ref[...] = jnp.maximum(st, 0.0).astype(st_ref.dtype)


def tail_forward(view1, view2, lin, lin2_padded, img_head, txt_head):
    # TODO(synk): the ~6.5 MiB shared-weight fetch could be prefetched via a
    # cross-pallas_call DMA future started during the branch kernels (P10).
    B, D = view1.shape
    wl, bl = lin
    w2p, b2p = lin2_padded          # pre-padded to a 128-wide lane-dense slab
    wi, bi = img_head
    wt, bt = txt_head
    M = wl.shape[1]
    P = w2p.shape[1]
    S = wi.shape[1]

    tm = _pick_m_tile(B)
    nm = B // tm

    grid_spec = pltpu.PrefetchScalarGridSpec(
        num_scalar_prefetch=0,
        grid=(nm,),
        in_specs=[
            pl.BlockSpec((tm, D), lambda i: (i, 0)),   # view1 (bf16)
            pl.BlockSpec((tm, D), lambda i: (i, 0)),   # view2 (bf16)
            _resident((D, M), 1),                      # Wl
            _resident((1, M), 1),                      # bl
            _resident((M, P), 1),                      # W2 (padded)
            _resident((1, P), 1),                      # b2 (padded)
            _resident((M, S), 1),                      # Wi
            _resident((1, S), 1),                      # bi
            _resident((M, S), 1),                      # Wt
            _resident((1, S), 1),                      # bt
        ],
        out_specs=(
            pl.BlockSpec((tm, M), lambda i: (i, 0)),   # feat1
            pl.BlockSpec((tm, M), lambda i: (i, 0)),   # feat2
            pl.BlockSpec((tm, P), lambda i: (i, 0)),   # pred1 (padded)
            pl.BlockSpec((tm, P), lambda i: (i, 0)),   # pred2 (padded)
            pl.BlockSpec((tm, S), lambda i: (i, 0)),   # stu img
            pl.BlockSpec((tm, S), lambda i: (i, 0)),   # stu txt
        ),
    )
    return pl.pallas_call(
        _tail_kernel,
        out_shape=(
            jax.ShapeDtypeStruct((B, M), jnp.float32),
            jax.ShapeDtypeStruct((B, M), jnp.float32),
            jax.ShapeDtypeStruct((B, P), jnp.float32),
            jax.ShapeDtypeStruct((B, P), jnp.float32),
            jax.ShapeDtypeStruct((B, S), jnp.float32),
            jax.ShapeDtypeStruct((B, S), jnp.float32),
        ),
        grid_spec=grid_spec,
        compiler_params=pltpu.CompilerParams(
            dimension_semantics=("parallel",),
            vmem_limit_bytes=32 * 1024 * 1024),
    )(view1, view2, wl, bl, w2p, b2p, wi, bi, wt, bt)


# ----------------------------------------------------------------------------
# Parameter init (PyTorch nn.Linear-style uniform).  Weights pre-transposed to
# (in, out), stored bf16; biases f32.  linearLayer2 also pre-padded to 128.
# ----------------------------------------------------------------------------
def init_linear(key, in_dim, out_dim, w_dtype=jnp.bfloat16):
    kw, kb = jax.random.split(key)
    bound = 1.0 / (in_dim ** 0.5)
    w_t = jax.random.uniform(kw, (in_dim, out_dim), jnp.float32,
                             -bound, bound).astype(w_dtype)
    b = jax.random.uniform(kb, (1, out_dim), jnp.float32, -bound, bound)
    return w_t, b


def init_idcm_nn(key, img_input_dim, img_output_dim, txt_input_dim,
                 txt_output_dim, minus_one_dim, output_dim, stu_dim):
    # linearLayer is shared across both views -> dims must match.
    assert img_output_dim == txt_output_dim, \
        "shared linearLayer requires img_output_dim == txt_output_dim"
    keys = jax.random.split(key, 10)
    params = {
        "img_L1": init_linear(keys[0], img_input_dim, img_output_dim),
        "img_L2": init_linear(keys[1], img_output_dim, img_output_dim),
        "img_L3": init_linear(keys[2], img_output_dim, img_output_dim),
        "txt_L1": init_linear(keys[3], txt_input_dim, txt_output_dim),
        "txt_L2": init_linear(keys[4], txt_output_dim, txt_output_dim),
        "txt_L3": init_linear(keys[5], txt_output_dim, txt_output_dim),
        "linearLayer": init_linear(keys[6], img_output_dim, minus_one_dim),
        "linearLayer2": init_linear(keys[7], minus_one_dim, output_dim),
        "img_layer": init_linear(keys[8], minus_one_dim, stu_dim),
        "txt_layer": init_linear(keys[9], minus_one_dim, stu_dim),
    }
    # Hoisted lane-dense padding of the classifier (done once, not per call).
    w2, b2 = params["linearLayer2"]
    pad_to = max(128, ((output_dim + 127) // 128) * 128)
    params["linearLayer2_padded"] = (
        jnp.pad(w2, ((0, 0), (0, pad_to - output_dim))),
        jnp.pad(b2, ((0, 0), (0, pad_to - output_dim))),
    )
    return params


# ----------------------------------------------------------------------------
# Forward (semantics of IDCM_NN.forward)
# ----------------------------------------------------------------------------
@functools.partial(jax.jit, static_argnames=("output_dim",))
def idcm_nn_forward(params, img, txt, *, output_dim):
    # bf16 inputs: matches the in-kernel cast before the MXU, halves x traffic.
    img = img.astype(jnp.bfloat16)
    txt = txt.astype(jnp.bfloat16)
    # TODO(synk): on v7x the two independent branches could also run
    # concurrently on the two TensorCores via pl.core_map; here each branch's
    # batch "parallel" axis already shards across cores, branches run back-to-back.
    view1 = branch_forward(img, params["img_L1"], params["img_L2"],
                           params["img_L3"])
    view2 = branch_forward(txt, params["txt_L1"], params["txt_L2"],
                           params["txt_L3"])
    f1, f2, p1, p2, si, st = tail_forward(
        view1, view2, params["linearLayer"], params["linearLayer2_padded"],
        params["img_layer"], params["txt_layer"])
    return (f1, f2, p1[:, :output_dim], p2[:, :output_dim], si, st)


# ----------------------------------------------------------------------------
# Pure-JAX reference with identical dtype handling (bf16 weights, f32 accum).
# ----------------------------------------------------------------------------
def _ref_linear(x, layer, act=None):
    w, b = layer
    y = jnp.dot(x.astype(w.dtype), w, preferred_element_type=jnp.float32) + b
    if act == "tanh":
        y = jnp.tanh(y)
    elif act == "relu":
        y = jnp.maximum(y, 0.0)
    return y


def reference_forward(params, img, txt):
    x = _ref_linear(img, params["img_L1"], "tanh")
    x = _ref_linear(x, params["img_L2"], "tanh")
    v1 = _ref_linear(x, params["img_L3"], "tanh").astype(jnp.bfloat16)
    y = _ref_linear(txt, params["txt_L1"], "tanh")
    y = _ref_linear(y, params["txt_L2"], "tanh")
    v2 = _ref_linear(y, params["txt_L3"], "tanh").astype(jnp.bfloat16)
    v1f = _ref_linear(v1, params["linearLayer"])
    v2f = _ref_linear(v2, params["linearLayer"])
    v1p = _ref_linear(v1f, params["linearLayer2"])
    v2p = _ref_linear(v2f, params["linearLayer2"])
    s1 = _ref_linear(v1f, params["img_layer"], "relu")
    s2 = _ref_linear(v2f, params["txt_layer"], "relu")
    return v1f, v2f, v1p, v2p, s1, s2


# ----------------------------------------------------------------------------
if __name__ == "__main__":
    # Small shapes consistent with the module (real defaults: 4096/1024/1024/
    # 1024/1024/10 with 1024-wide student heads; scaled down here).
    B = 8
    img_input_dim = 256
    img_output_dim = 128
    txt_input_dim = 128
    txt_output_dim = 128
    minus_one_dim = 128
    output_dim = 10
    stu_dim = 128   # stands in for the fixed 1024 of img_layer / txt_layer

    key = jax.random.PRNGKey(0)
    k_params, k_img, k_txt = jax.random.split(key, 3)

    params = init_idcm_nn(k_params, img_input_dim, img_output_dim,
                          txt_input_dim, txt_output_dim, minus_one_dim,
                          output_dim, stu_dim)

    img = jax.random.normal(k_img, (B, img_input_dim), jnp.float32)
    txt = jax.random.normal(k_txt, (B, txt_input_dim), jnp.float32)

    outs = jax.block_until_ready(
        idcm_nn_forward(params, img, txt, output_dim=output_dim))

    # Shape checks.
    expected = [(B, minus_one_dim), (B, minus_one_dim),
                (B, output_dim), (B, output_dim),
                (B, stu_dim), (B, stu_dim)]
    assert [tuple(o.shape) for o in outs] == expected, \
        f"shape mismatch: {[o.shape for o in outs]}"

    # Loose numerical check against pure-JAX reference (same bf16/f32 mix).
    refs = jax.block_until_ready(reference_forward(params, img, txt))
    for o, r in zip(outs, refs):
        assert jnp.allclose(o, r, rtol=5e-2, atol=5e-2), \
            f"value mismatch: max abs diff {jnp.max(jnp.abs(o - r))}"

    print("KERNEL_OK")
</pallas_src>

<mosaic_0001>
module attributes {stable_mosaic.version = 11 : i64} {
  func.func @_branch_kernel(%arg0: i32, %arg1: i32, %arg2: memref<8x128xbf16, #tpu.memory_space<vmem>>, %arg3: memref<128x128xbf16, #tpu.memory_space<vmem>>, %arg4: memref<1x128xf32, #tpu.memory_space<vmem>>, %arg5: memref<128x128xbf16, #tpu.memory_space<vmem>>, %arg6: memref<1x128xf32, #tpu.memory_space<vmem>>, %arg7: memref<128x128xbf16, #tpu.memory_space<vmem>>, %arg8: memref<1x128xf32, #tpu.memory_space<vmem>>, %arg9: memref<8x128xbf16, #tpu.memory_space<vmem>>, %arg10: memref<8x128xf32, #tpu.memory_space<vmem>>) attributes {dimension_semantics = [#tpu.dimension_semantics<parallel>, #tpu.dimension_semantics<arbitrary>], iteration_bounds = array<i64: 1, 1>, scalar_prefetch = 0 : i64, scratch_operands = 1 : i64, tpu.core_type = #tpu.core_type<tc>, window_params = [{transform_indices = @transform_0, window_bounds = array<i64: 8, 128>}, {transform_indices = @transform_1, window_bounds = array<i64: 128, 128>}, {pipeline_mode = #tpu.pipeline_mode<synchronous>, transform_indices = @transform_2, window_bounds = array<i64: 1, 128>}, {pipeline_mode = #tpu.pipeline_mode<synchronous>, transform_indices = @transform_3, window_bounds = array<i64: 128, 128>}, {pipeline_mode = #tpu.pipeline_mode<synchronous>, transform_indices = @transform_4, window_bounds = array<i64: 1, 128>}, {pipeline_mode = #tpu.pipeline_mode<synchronous>, transform_indices = @transform_5, window_bounds = array<i64: 128, 128>}, {pipeline_mode = #tpu.pipeline_mode<synchronous>, transform_indices = @transform_6, window_bounds = array<i64: 1, 128>}, {transform_indices = @transform_7, window_bounds = array<i64: 8, 128>}]} {
    %c0 = arith.constant 0 : index
    %c0_0 = arith.constant 0 : index
    %0 = vector.load %arg2[%c0, %c0_0] : memref<8x128xbf16, #tpu.memory_space<vmem>>, vector<8x128xbf16>
    %c0_1 = arith.constant 0 : index
    %c0_2 = arith.constant 0 : index
    %1 = vector.load %arg3[%c0_1, %c0_2] : memref<128x128xbf16, #tpu.memory_space<vmem>>, vector<128x128xbf16>
    %cst = arith.constant dense<0.000000e+00> : vector<8x128xf32>
    %2 = tpu.matmul %0, %1, %cst {dimension_numbers = #tpu.dot_dimension_numbers<[1], [0], [0], [1], [0, 0, 1, 1], [], []>} : vector<8x128xbf16>, vector<128x128xbf16>, vector<8x128xf32> -> vector<8x128xf32>
    %c0_i32 = arith.constant 0 : i32
    %3 = arith.cmpi eq, %arg1, %c0_i32 : i32
    %4 = arith.extui %3 : i1 to i32
    %c0_i32_3 = arith.constant 0 : i32
    %5 = arith.cmpi ne, %4, %c0_i32_3 : i32
    scf.if %5 {
      %c0_8 = arith.constant 0 : index
      %c0_9 = arith.constant 0 : index
      %12 = vector.load %arg4[%c0_8, %c0_9] : memref<1x128xf32, #tpu.memory_space<vmem>>, vector<1x128xf32>
      %13 = vector.broadcast %12 : vector<1x128xf32> to vector<8x128xf32>
      %14 = arith.addf %2, %13 : vector<8x128xf32>
      %c0_10 = arith.constant 0 : index
      %c0_11 = arith.constant 0 : index
      %15 = vector.load %arg10[%c0_10, %c0_11] : memref<8x128xf32, #tpu.memory_space<vmem>>, vector<8x128xf32>
      tpu.vector_store %arg10[%c0_10, %c0_11], %14 {strides = array<i32>} : memref<8x128xf32, #tpu.memory_space<vmem>>, vector<8x128xf32>,
    } else {
    }
    %c0_i32_4 = arith.constant 0 : i32
    %6 = arith.cmpi sgt, %arg1, %c0_i32_4 : i32
    %7 = arith.extui %6 : i1 to i32
    %c0_i32_5 = arith.constant 0 : i32
    %8 = arith.cmpi ne, %7, %c0_i32_5 : i32
    scf.if %8 {
      %c0_8 = arith.constant 0 : index
      %c0_9 = arith.constant 0 : index
      %12 = vector.load %arg10[%c0_8, %c0_9] : memref<8x128xf32, #tpu.memory_space<vmem>>, vector<8x128xf32>
      %13 = arith.addf %12, %2 : vector<8x128xf32>
      %c0_10 = arith.constant 0 : index
      %c0_11 = arith.constant 0 : index
      %14 = vector.load %arg10[%c0_10, %c0_11] : memref<8x128xf32, #tpu.memory_space<vmem>>, vector<8x128xf32>
      tpu.vector_store %arg10[%c0_10, %c0_11], %13 {strides = array<i32>} : memref<8x128xf32, #tpu.memory_space<vmem>>, vector<8x128xf32>,
    } else {
    }
    %c0_i32_6 = arith.constant 0 : i32
    %9 = arith.cmpi eq, %arg1, %c0_i32_6 : i32
    %10 = arith.extui %9 : i1 to i32
    %c0_i32_7 = arith.constant 0 : i32
    %11 = arith.cmpi ne, %10, %c0_i32_7 : i32
    scf.if %11 {
      %c0_8 = arith.constant 0 : index
      %c0_9 = arith.constant 0 : index
      %12 = vector.load %arg10[%c0_8, %c0_9] : memref<8x128xf32, #tpu.memory_space<vmem>>, vector<8x128xf32>
      %13 = math.tanh %12 : vector<8x128xf32>
      %14 = arith.truncf %13 : vector<8x128xf32> to vector<8x128xbf16>
      %c0_10 = arith.constant 0 : index
      %c0_11 = arith.constant 0 : index
      %15 = vector.load %arg5[%c0_10, %c0_11] : memref<128x128xbf16, #tpu.memory_space<vmem>>, vector<128x128xbf16>
      %cst_12 = arith.constant dense<0.000000e+00> : vector<8x128xf32>
      %16 = tpu.matmul %14, %15, %cst_12 {dimension_numbers = #tpu.dot_dimension_numbers<[1], [0], [0], [1], [0, 0, 1, 1], [], []>} : vector<8x128xbf16>, vector<128x128xbf16>, vector<8x128xf32> -> vector<8x128xf32>
      %c0_13 = arith.constant 0 : index
      %c0_14 = arith.constant 0 : index
      %17 = vector.load %arg6[%c0_13, %c0_14] : memref<1x128xf32, #tpu.memory_space<vmem>>, vector<1x128xf32>
      %18 = vector.broadcast %17 : vector<1x128xf32> to vector<8x128xf32>
      %19 = arith.addf %16, %18 : vector<8x128xf32>
      %20 = math.tanh %19 : vector<8x128xf32>
      %21 = arith.truncf %20 : vector<8x128xf32> to vector<8x128xbf16>
      %c0_15 = arith.constant 0 : index
      %c0_16 = arith.constant 0 : index
      %22 = vector.load %arg7[%c0_15, %c0_16] : memref<128x128xbf16, #tpu.memory_space<vmem>>, vector<128x128xbf16>
      %cst_17 = arith.constant dense<0.000000e+00> : vector<8x128xf32>
      %23 = tpu.matmul %21, %22, %cst_17 {dimension_numbers = #tpu.dot_dimension_numbers<[1], [0], [0], [1], [0, 0, 1, 1], [], []>} : vector<8x128xbf16>, vector<128x128xbf16>, vector<8x128xf32> -> vector<8x128xf32>
      %c0_18 = arith.constant 0 : index
      %c0_19 = arith.constant 0 : index
      %24 = vector.load %arg8[%c0_18, %c0_19] : memref<1x128xf32, #tpu.memory_space<vmem>>, vector<1x128xf32>
      %25 = vector.broadcast %24 : vector<1x128xf32> to vector<8x128xf32>
      %26 = arith.addf %23, %25 : vector<8x128xf32>
      %27 = math.tanh %26 : vector<8x128xf32>
      %28 = arith.truncf %27 : vector<8x128xf32> to vector<8x128xbf16>
      %c0_20 = arith.constant 0 : index
      %c0_21 = arith.constant 0 : index
      %29 = vector.load %arg9[%c0_20, %c0_21] : memref<8x128xbf16, #tpu.memory_space<vmem>>, vector<8x128xbf16>
      tpu.vector_store %arg9[%c0_20, %c0_21], %28 {strides = array<i32>} : memref<8x128xbf16, #tpu.memory_space<vmem>>, vector<8x128xbf16>,
    } else {
    }
    return
  }
  func.func @transform_0(%arg0: i32, %arg1: i32) -> (i32, i32) {
    %c0_i32 = arith.constant 0 : i32
    return %arg0, %arg1 : i32, i32
  }
  func.func @transform_1(%arg0: i32, %arg1: i32) -> (i32, i32) {
    %c0_i32 = arith.constant 0 : i32
    %c0_i32_0 = arith.constant 0 : i32
    return %arg1, %c0_i32 : i32, i32
  }
  func.func @transform_2(%arg0: i32, %arg1: i32) -> (i32, i32) {
    %c0_i32 = arith.constant 0 : i32
    %c0_i32_0 = arith.constant 0 : i32
    %c0_i32_1 = arith.constant 0 : i32
    return %c0_i32, %c0_i32_0 : i32, i32
  }
  func.func @transform_3(%arg0: i32, %arg1: i32) -> (i32, i32) {
    %c0_i32 = arith.constant 0 : i32
    %c0_i32_0 = arith.constant 0 : i32
    %c0_i32_1 = arith.constant 0 : i32
    return %c0_i32, %c0_i32_0 : i32, i32
  }
  func.func @transform_4(%arg0: i32, %arg1: i32) -> (i32, i32) {
    %c0_i32 = arith.constant 0 : i32
    %c0_i32_0 = arith.constant 0 : i32
    %c0_i32_1 = arith.constant 0 : i32
    return %c0_i32, %c0_i32_0 : i32, i32
  }
  func.func @transform_5(%arg0: i32, %arg1: i32) -> (i32, i32) {
    %c0_i32 = arith.constant 0 : i32
    %c0_i32_0 = arith.constant 0 : i32
    %c0_i32_1 = arith.constant 0 : i32
    return %c0_i32, %c0_i32_0 : i32, i32
  }
  func.func @transform_6(%arg0: i32, %arg1: i32) -> (i32, i32) {
    %c0_i32 = arith.constant 0 : i32
    %c0_i32_0 = arith.constant 0 : i32
    %c0_i32_1 = arith.constant 0 : i32
    return %c0_i32, %c0_i32_0 : i32, i32
  }
  func.func @transform_7(%arg0: i32, %arg1: i32) -> (i32, i32) {
    %c0_i32 = arith.constant 0 : i32
    %c0_i32_0 = arith.constant 0 : i32
    return %arg0, %c0_i32 : i32, i32
  }
}

module attributes {stable_mosaic.version = 11 : i64} {
  func.func @_branch_kernel(%arg0: i32, %arg1: i32, %arg2: memref<8x256xbf16, #tpu.memory_space<vmem>>, %arg3: memref<256x128xbf16, #tpu.memory_space<vmem>>, %arg4: memref<1x128xf32, #tpu.memory_space<vmem>>, %arg5: memref<128x128xbf16, #tpu.memory_space<vmem>>, %arg6: memref<1x128xf32, #tpu.memory_space<vmem>>, %arg7: memref<128x128xbf16, #tpu.memory_space<vmem>>, %arg8: memref<1x128xf32, #tpu.memory_space<vmem>>, %arg9: memref<8x128xbf16, #tpu.memory_space<vmem>>, %arg10: memref<8x128xf32, #tpu.memory_space<vmem>>) attributes {dimension_semantics = [#tpu.dimension_semantics<parallel>, #tpu.dimension_semantics<arbitrary>], iteration_bounds = array<i64: 1, 1>, scalar_prefetch = 0 : i64, scratch_operands = 1 : i64, tpu.core_type = #tpu.core_type<tc>, window_params = [{transform_indices = @transform_0, window_bounds = array<i64: 8, 256>}, {transform_indices = @transform_1, window_bounds = array<i64: 256, 128>}, {pipeline_mode = #tpu.pipeline_mode<synchronous>, transform_indices = @transform_2, window_bounds = array<i64: 1, 128>}, {pipeline_mode = #tpu.pipeline_mode<synchronous>, transform_indices = @transform_3, window_bounds = array<i64: 128, 128>}, {pipeline_mode = #tpu.pipeline_mode<synchronous>, transform_indices = @transform_4, window_bounds = array<i64: 1, 128>}, {pipeline_mode = #tpu.pipeline_mode<synchronous>, transform_indices = @transform_5, window_bounds = array<i64: 128, 128>}, {pipeline_mode = #tpu.pipeline_mode<synchronous>, transform_indices = @transform_6, window_bounds = array<i64: 1, 128>}, {transform_indices = @transform_7, window_bounds = array<i64: 8, 128>}]} {
    %c0 = arith.constant 0 : index
    %c0_0 = arith.constant 0 : index
    %0 = vector.load %arg2[%c0, %c0_0] : memref<8x256xbf16, #tpu.memory_space<vmem>>, vector<8x256xbf16>
    %c0_1 = arith.constant 0 : index
    %c0_2 = arith.constant 0 : index
    %1 = vector.load %arg3[%c0_1, %c0_2] : memref<256x128xbf16, #tpu.memory_space<vmem>>, vector<256x128xbf16>
    %cst = arith.constant dense<0.000000e+00> : vector<8x128xf32>
    %2 = tpu.matmul %0, %1, %cst {dimension_numbers = #tpu.dot_dimension_numbers<[1], [0], [0], [1], [0, 0, 1, 1], [], []>} : vector<8x256xbf16>, vector<256x128xbf16>, vector<8x128xf32> -> vector<8x128xf32>
    %c0_i32 = arith.constant 0 : i32
    %3 = arith.cmpi eq, %arg1, %c0_i32 : i32
    %4 = arith.extui %3 : i1 to i32
    %c0_i32_3 = arith.constant 0 : i32
    %5 = arith.cmpi ne, %4, %c0_i32_3 : i32
    scf.if %5 {
      %c0_8 = arith.constant 0 : index
      %c0_9 = arith.constant 0 : index
      %12 = vector.load %arg4[%c0_8, %c0_9] : memref<1x128xf32, #tpu.memory_space<vmem>>, vector<1x128xf32>
      %13 = vector.broadcast %12 : vector<1x128xf32> to vector<8x128xf32>
      %14 = arith.addf %2, %13 : vector<8x128xf32>
      %c0_10 = arith.constant 0 : index
      %c0_11 = arith.constant 0 : index
      %15 = vector.load %arg10[%c0_10, %c0_11] : memref<8x128xf32, #tpu.memory_space<vmem>>, vector<8x128xf32>
      tpu.vector_store %arg10[%c0_10, %c0_11], %14 {strides = array<i32>} : memref<8x128xf32, #tpu.memory_space<vmem>>, vector<8x128xf32>,
    } else {
    }
    %c0_i32_4 = arith.constant 0 : i32
    %6 = arith.cmpi sgt, %arg1, %c0_i32_4 : i32
    %7 = arith.extui %6 : i1 to i32
    %c0_i32_5 = arith.constant 0 : i32
    %8 = arith.cmpi ne, %7, %c0_i32_5 : i32
    scf.if %8 {
      %c0_8 = arith.constant 0 : index
      %c0_9 = arith.constant 0 : index
      %12 = vector.load %arg10[%c0_8, %c0_9] : memref<8x128xf32, #tpu.memory_space<vmem>>, vector<8x128xf32>
      %13 = arith.addf %12, %2 : vector<8x128xf32>
      %c0_10 = arith.constant 0 : index
      %c0_11 = arith.constant 0 : index
      %14 = vector.load %arg10[%c0_10, %c0_11] : memref<8x128xf32, #tpu.memory_space<vmem>>, vector<8x128xf32>
      tpu.vector_store %arg10[%c0_10, %c0_11], %13 {strides = array<i32>} : memref<8x128xf32, #tpu.memory_space<vmem>>, vector<8x128xf32>,
    } else {
    }
    %c0_i32_6 = arith.constant 0 : i32
    %9 = arith.cmpi eq, %arg1, %c0_i32_6 : i32
    %10 = arith.extui %9 : i1 to i32
    %c0_i32_7 = arith.constant 0 : i32
    %11 = arith.cmpi ne, %10, %c0_i32_7 : i32
    scf.if %11 {
      %c0_8 = arith.constant 0 : index
      %c0_9 = arith.constant 0 : index
      %12 = vector.load %arg10[%c0_8, %c0_9] : memref<8x128xf32, #tpu.memory_space<vmem>>, vector<8x128xf32>
      %13 = math.tanh %12 : vector<8x128xf32>
      %14 = arith.truncf %13 : vector<8x128xf32> to vector<8x128xbf16>
      %c0_10 = arith.constant 0 : index
      %c0_11 = arith.constant 0 : index
      %15 = vector.load %arg5[%c0_10, %c0_11] : memref<128x128xbf16, #tpu.memory_space<vmem>>, vector<128x128xbf16>
      %cst_12 = arith.constant dense<0.000000e+00> : vector<8x128xf32>
      %16 = tpu.matmul %14, %15, %cst_12 {dimension_numbers = #tpu.dot_dimension_numbers<[1], [0], [0], [1], [0, 0, 1, 1], [], []>} : vector<8x128xbf16>, vector<128x128xbf16>, vector<8x128xf32> -> vector<8x128xf32>
      %c0_13 = arith.constant 0 : index
      %c0_14 = arith.constant 0 : index
      %17 = vector.load %arg6[%c0_13, %c0_14] : memref<1x128xf32, #tpu.memory_space<vmem>>, vector<1x128xf32>
      %18 = vector.broadcast %17 : vector<1x128xf32> to vector<8x128xf32>
      %19 = arith.addf %16, %18 : vector<8x128xf32>
      %20 = math.tanh %19 : vector<8x128xf32>
      %21 = arith.truncf %20 : vector<8x128xf32> to vector<8x128xbf16>
      %c0_15 = arith.constant 0 : index
      %c0_16 = arith.constant 0 : index
      %22 = vector.load %arg7[%c0_15, %c0_16] : memref<128x128xbf16, #tpu.memory_space<vmem>>, vector<128x128xbf16>
      %cst_17 = arith.constant dense<0.000000e+00> : vector<8x128xf32>
      %23 = tpu.matmul %21, %22, %cst_17 {dimension_numbers = #tpu.dot_dimension_numbers<[1], [0], [0], [1], [0, 0, 1, 1], [], []>} : vector<8x128xbf16>, vector<128x128xbf16>, vector<8x128xf32> -> vector<8x128xf32>
      %c0_18 = arith.constant 0 : index
      %c0_19 = arith.constant 0 : index
      %24 = vector.load %arg8[%c0_18, %c0_19] : memref<1x128xf32, #tpu.memory_space<vmem>>, vector<1x128xf32>
      %25 = vector.broadcast %24 : vector<1x128xf32> to vector<8x128xf32>
      %26 = arith.addf %23, %25 : vector<8x128xf32>
      %27 = math.tanh %26 : vector<8x128xf32>
      %28 = arith.truncf %27 : vector<8x128xf32> to vector<8x128xbf16>
      %c0_20 = arith.constant 0 : index
      %c0_21 = arith.constant 0 : index
      %29 = vector.load %arg9[%c0_20, %c0_21] : memref<8x128xbf16, #tpu.memory_space<vmem>>, vector<8x128xbf16>
      tpu.vector_store %arg9[%c0_20, %c0_21], %28 {strides = array<i32>} : memref<8x128xbf16, #tpu.memory_space<vmem>>, vector<8x128xbf16>,
    } else {
    }
    return
  }
  func.func @transform_0(%arg0: i32, %arg1: i32) -> (i32, i32) {
    %c0_i32 = arith.constant 0 : i32
    return %arg0, %arg1 : i32, i32
  }
  func.func @transform_1(%arg0: i32, %arg1: i32) -> (i32, i32) {
    %c0_i32 = arith.constant 0 : i32
    %c0_i32_0 = arith.constant 0 : i32
    return %arg1, %c0_i32 : i32, i32
  }
  func.func @transform_2(%arg0: i32, %arg1: i32) -> (i32, i32) {
    %c0_i32 = arith.constant 0 : i32
    %c0_i32_0 = arith.constant 0 : i32
    %c0_i32_1 = arith.constant 0 : i32
    return %c0_i32, %c0_i32_0 : i32, i32
  }
  func.func @transform_3(%arg0: i32, %arg1: i32) -> (i32, i32) {
    %c0_i32 = arith.constant 0 : i32
    %c0_i32_0 = arith.constant 0 : i32
    %c0_i32_1 = arith.constant 0 : i32
    return %c0_i32, %c0_i32_0 : i32, i32
  }
  func.func @transform_4(%arg0: i32, %arg1: i32) -> (i32, i32) {
    %c0_i32 = arith.constant 0 : i32
    %c0_i32_0 = arith.constant 0 : i32
    %c0_i32_1 = arith.constant 0 : i32
    return %c0_i32, %c0_i32_0 : i32, i32
  }
  func.func @transform_5(%arg0: i32, %arg1: i32) -> (i32, i32) {
    %c0_i32 = arith.constant 0 : i32
    %c0_i32_0 = arith.constant 0 : i32
    %c0_i32_1 = arith.constant 0 : i32
    return %c0_i32, %c0_i32_0 : i32, i32
  }
  func.func @transform_6(%arg0: i32, %arg1: i32) -> (i32, i32) {
    %c0_i32 = arith.constant 0 : i32
    %c0_i32_0 = arith.constant 0 : i32
    %c0_i32_1 = arith.constant 0 : i32
    return %c0_i32, %c0_i32_0 : i32, i32
  }
  func.func @transform_7(%arg0: i32, %arg1: i32) -> (i32, i32) {
    %c0_i32 = arith.constant 0 : i32
    %c0_i32_0 = arith.constant 0 : i32
    return %arg0, %c0_i32 : i32, i32
  }
}

module attributes {stable_mosaic.version = 11 : i64} {
  func.func @_tail_kernel(%arg0: i32, %arg1: memref<8x128xbf16, #tpu.memory_space<vmem>>, %arg2: memref<8x128xbf16, #tpu.memory_space<vmem>>, %arg3: memref<128x128xbf16, #tpu.memory_space<vmem>>, %arg4: memref<1x128xf32, #tpu.memory_space<vmem>>, %arg5: memref<128x128xbf16, #tpu.memory_space<vmem>>, %arg6: memref<1x128xf32, #tpu.memory_space<vmem>>, %arg7: memref<128x128xbf16, #tpu.memory_space<vmem>>, %arg8: memref<1x128xf32, #tpu.memory_space<vmem>>, %arg9: memref<128x128xbf16, #tpu.memory_space<vmem>>, %arg10: memref<1x128xf32, #tpu.memory_space<vmem>>, %arg11: memref<8x128xf32, #tpu.memory_space<vmem>>, %arg12: memref<8x128xf32, #tpu.memory_space<vmem>>, %arg13: memref<8x128xf32, #tpu.memory_space<vmem>>, %arg14: memref<8x128xf32, #tpu.memory_space<vmem>>, %arg15: memref<8x128xf32, #tpu.memory_space<vmem>>, %arg16: memref<8x128xf32, #tpu.memory_space<vmem>>) attributes {dimension_semantics = [#tpu.dimension_semantics<parallel>], iteration_bounds = array<i64: 1>, scalar_prefetch = 0 : i64, scratch_operands = 0 : i64, tpu.core_type = #tpu.core_type<tc>, window_params = [{transform_indices = @transform_0, window_bounds = array<i64: 8, 128>}, {transform_indices = @transform_1, window_bounds = array<i64: 8, 128>}, {pipeline_mode = #tpu.pipeline_mode<synchronous>, transform_indices = @transform_2, window_bounds = array<i64: 128, 128>}, {pipeline_mode = #tpu.pipeline_mode<synchronous>, transform_indices = @transform_3, window_bounds = array<i64: 1, 128>}, {pipeline_mode = #tpu.pipeline_mode<synchronous>, transform_indices = @transform_4, window_bounds = array<i64: 128, 128>}, {pipeline_mode = #tpu.pipeline_mode<synchronous>, transform_indices = @transform_5, window_bounds = array<i64: 1, 128>}, {pipeline_mode = #tpu.pipeline_mode<synchronous>, transform_indices = @transform_6, window_bounds = array<i64: 128, 128>}, {pipeline_mode = #tpu.pipeline_mode<synchronous>, transform_indices = @transform_7, window_bounds = array<i64: 1, 128>}, {pipeline_mode = #tpu.pipeline_mode<synchronous>, transform_indices = @transform_8, window_bounds = array<i64: 128, 128>}, {pipeline_mode = #tpu.pipeline_mode<synchronous>, transform_indices = @transform_9, window_bounds = array<i64: 1, 128>}, {transform_indices = @transform_10, window_bounds = array<i64: 8, 128>}, {transform_indices = @transform_11, window_bounds = array<i64: 8, 128>}, {transform_indices = @transform_12, window_bounds = array<i64: 8, 128>}, {transform_indices = @transform_13, window_bounds = array<i64: 8, 128>}, {transform_indices = @transform_14, window_bounds = array<i64: 8, 128>}, {transform_indices = @transform_15, window_bounds = array<i64: 8, 128>}]} {
    %c0 = arith.constant 0 : index
    %c0_0 = arith.constant 0 : index
    %0 = vector.load %arg1[%c0, %c0_0] : memref<8x128xbf16, #tpu.memory_space<vmem>>, vector<8x128xbf16>
    %c0_1 = arith.constant 0 : index
    %c0_2 = arith.constant 0 : index
    %1 = vector.load %arg3[%c0_1, %c0_2] : memref<128x128xbf16, #tpu.memory_space<vmem>>, vector<128x128xbf16>
    %cst = arith.constant dense<0.000000e+00> : vector<8x128xf32>
    %2 = tpu.matmul %0, %1, %cst {dimension_numbers = #tpu.dot_dimension_numbers<[1], [0], [0], [1], [0, 0, 1, 1], [], []>} : vector<8x128xbf16>, vector<128x128xbf16>, vector<8x128xf32> -> vector<8x128xf32>
    %c0_3 = arith.constant 0 : index
    %c0_4 = arith.constant 0 : index
    %3 = vector.load %arg4[%c0_3, %c0_4] : memref<1x128xf32, #tpu.memory_space<vmem>>, vector<1x128xf32>
    %4 = vector.broadcast %3 : vector<1x128xf32> to vector<8x128xf32>
    %5 = arith.addf %2, %4 : vector<8x128xf32>
    %c0_5 = arith.constant 0 : index
    %c0_6 = arith.constant 0 : index
    %6 = vector.load %arg2[%c0_5, %c0_6] : memref<8x128xbf16, #tpu.memory_space<vmem>>, vector<8x128xbf16>
    %c0_7 = arith.constant 0 : index
    %c0_8 = arith.constant 0 : index
    %7 = vector.load %arg3[%c0_7, %c0_8] : memref<128x128xbf16, #tpu.memory_space<vmem>>, vector<128x128xbf16>
    %cst_9 = arith.constant dense<0.000000e+00> : vector<8x128xf32>
    %8 = tpu.matmul %6, %7, %cst_9 {dimension_numbers = #tpu.dot_dimension_numbers<[1], [0], [0], [1], [0, 0, 1, 1], [], []>} : vector<8x128xbf16>, vector<128x128xbf16>, vector<8x128xf32> -> vector<8x128xf32>
    %c0_10 = arith.constant 0 : index
    %c0_11 = arith.constant 0 : index
    %9 = vector.load %arg4[%c0_10, %c0_11] : memref<1x128xf32, #tpu.memory_space<vmem>>, vector<1x128xf32>
    %10 = vector.broadcast %9 : vector<1x128xf32> to vector<8x128xf32>
    %11 = arith.addf %8, %10 : vector<8x128xf32>
    %c0_12 = arith.constant 0 : index
    %c0_13 = arith.constant 0 : index
    %12 = vector.load %arg11[%c0_12, %c0_13] : memref<8x128xf32, #tpu.memory_space<vmem>>, vector<8x128xf32>
    tpu.vector_store %arg11[%c0_12, %c0_13], %5 {strides = array<i32>} : memref<8x128xf32, #tpu.memory_space<vmem>>, vector<8x128xf32>,
    %c0_14 = arith.constant 0 : index
    %c0_15 = arith.constant 0 : index
    %13 = vector.load %arg12[%c0_14, %c0_15] : memref<8x128xf32, #tpu.memory_space<vmem>>, vector<8x128xf32>
    tpu.vector_store %arg12[%c0_14, %c0_15], %11 {strides = array<i32>} : memref<8x128xf32, #tpu.memory_space<vmem>>, vector<8x128xf32>,
    %14 = arith.truncf %5 : vector<8x128xf32> to vector<8x128xbf16>
    %15 = arith.truncf %11 : vector<8x128xf32> to vector<8x128xbf16>
    %c0_16 = arith.constant 0 : index
    %c0_17 = arith.constant 0 : index
    %16 = vector.load %arg5[%c0_16, %c0_17] : memref<128x128xbf16, #tpu.memory_space<vmem>>, vector<128x128xbf16>
    %cst_18 = arith.constant dense<0.000000e+00> : vector<8x128xf32>
    %17 = tpu.matmul %14, %16, %cst_18 {dimension_numbers = #tpu.dot_dimension_numbers<[1], [0], [0], [1], [0, 0, 1, 1], [], []>} : vector<8x128xbf16>, vector<128x128xbf16>, vector<8x128xf32> -> vector<8x128xf32>
    %c0_19 = arith.constant 0 : index
    %c0_20 = arith.constant 0 : index
    %18 = vector.load %arg6[%c0_19, %c0_20] : memref<1x128xf32, #tpu.memory_space<vmem>>, vector<1x128xf32>
    %19 = vector.broadcast %18 : vector<1x128xf32> to vector<8x128xf32>
    %20 = arith.addf %17, %19 : vector<8x128xf32>
    %c0_21 = arith.constant 0 : index
    %c0_22 = arith.constant 0 : index
    %21 = vector.load %arg13[%c0_21, %c0_22] : memref<8x128xf32, #tpu.memory_space<vmem>>, vector<8x128xf32>
    tpu.vector_store %arg13[%c0_21, %c0_22], %20 {strides = array<i32>} : memref<8x128xf32, #tpu.memory_space<vmem>>, vector<8x128xf32>,
    %c0_23 = arith.constant 0 : index
    %c0_24 = arith.constant 0 : index
    %22 = vector.load %arg5[%c0_23, %c0_24] : memref<128x128xbf16, #tpu.memory_space<vmem>>, vector<128x128xbf16>
    %cst_25 = arith.constant dense<0.000000e+00> : vector<8x128xf32>
    %23 = tpu.matmul %15, %22, %cst_25 {dimension_numbers = #tpu.dot_dimension_numbers<[1], [0], [0], [1], [0, 0, 1, 1], [], []>} : vector<8x128xbf16>, vector<128x128xbf16>, vector<8x128xf32> -> vector<8x128xf32>
    %c0_26 = arith.constant 0 : index
    %c0_27 = arith.constant 0 : index
    %24 = vector.load %arg6[%c0_26, %c0_27] : memref<1x128xf32, #tpu.memory_space<vmem>>, vector<1x128xf32>
    %25 = vector.broadcast %24 : vector<1x128xf32> to vector<8x128xf32>
    %26 = arith.addf %23, %25 : vector<8x128xf32>
    %c0_28 = arith.constant 0 : index
    %c0_29 = arith.constant 0 : index
    %27 = vector.load %arg14[%c0_28, %c0_29] : memref<8x128xf32, #tpu.memory_space<vmem>>, vector<8x128xf32>
    tpu.vector_store %arg14[%c0_28, %c0_29], %26 {strides = array<i32>} : memref<8x128xf32, #tpu.memory_space<vmem>>, vector<8x128xf32>,
    %c0_30 = arith.constant 0 : index
    %c0_31 = arith.constant 0 : index
    %28 = vector.load %arg7[%c0_30, %c0_31] : memref<128x128xbf16, #tpu.memory_space<vmem>>, vector<128x128xbf16>
    %cst_32 = arith.constant dense<0.000000e+00> : vector<8x128xf32>
    %29 = tpu.matmul %14, %28, %cst_32 {dimension_numbers = #tpu.dot_dimension_numbers<[1], [0], [0], [1], [0, 0, 1, 1], [], []>} : vector<8x128xbf16>, vector<128x128xbf16>, vector<8x128xf32> -> vector<8x128xf32>
    %c0_33 = arith.constant 0 : index
    %c0_34 = arith.constant 0 : index
    %30 = vector.load %arg8[%c0_33, %c0_34] : memref<1x128xf32, #tpu.memory_space<vmem>>, vector<1x128xf32>
    %31 = vector.broadcast %30 : vector<1x128xf32> to vector<8x128xf32>
    %32 = arith.addf %29, %31 : vector<8x128xf32>
    %cst_35 = arith.constant 0.000000e+00 : f32
    %33 = vector.broadcast %cst_35 : f32 to vector<8x128xf32>
    %34 = arith.maximumf %32, %33 : vector<8x128xf32>
    %c0_36 = arith.constant 0 : index
    %c0_37 = arith.constant 0 : index
    %35 = vector.load %arg15[%c0_36, %c0_37] : memref<8x128xf32, #tpu.memory_space<vmem>>, vector<8x128xf32>
    tpu.vector_store %arg15[%c0_36, %c0_37], %34 {strides = array<i32>} : memref<8x128xf32, #tpu.memory_space<vmem>>, vector<8x128xf32>,
    %c0_38 = arith.constant 0 : index
    %c0_39 = arith.constant 0 : index
    %36 = vector.load %arg9[%c0_38, %c0_39] : memref<128x128xbf16, #tpu.memory_space<vmem>>, vector<128x128xbf16>
    %cst_40 = arith.constant dense<0.000000e+00> : vector<8x128xf32>
    %37 = tpu.matmul %15, %36, %cst_40 {dimension_numbers = #tpu.dot_dimension_numbers<[1], [0], [0], [1], [0, 0, 1, 1], [], []>} : vector<8x128xbf16>, vector<128x128xbf16>, vector<8x128xf32> -> vector<8x128xf32>
    %c0_41 = arith.constant 0 : index
    %c0_42 = arith.constant 0 : index
    %38 = vector.load %arg10[%c0_41, %c0_42] : memref<1x128xf32, #tpu.memory_space<vmem>>, vector<1x128xf32>
    %39 = vector.broadcast %38 : vector<1x128xf32> to vector<8x128xf32>
    %40 = arith.addf %37, %39 : vector<8x128xf32>
    %cst_43 = arith.constant 0.000000e+00 : f32
    %41 = vector.broadcast %cst_43 : f32 to vector<8x128xf32>
    %42 = arith.maximumf %40, %41 : vector<8x128xf32>
    %c0_44 = arith.constant 0 : index
    %c0_45 = arith.constant 0 : index
    %43 = vector.load %arg16[%c0_44, %c0_45] : memref<8x128xf32, #tpu.memory_space<vmem>>, vector<8x128xf32>
    tpu.vector_store %arg16[%c0_44, %c0_45], %42 {strides = array<i32>} : memref<8x128xf32, #tpu.memory_space<vmem>>, vector<8x128xf32>,
    return
  }
  func.func @transform_0(%arg0: i32) -> (i32, i32) {
    %c0_i32 = arith.constant 0 : i32
    %c0_i32_0 = arith.constant 0 : i32
    return %arg0, %c0_i32 : i32, i32
  }
  func.func @transform_1(%arg0: i32) -> (i32, i32) {
    %c0_i32 = arith.constant 0 : i32
    %c0_i32_0 = arith.constant 0 : i32
    return %arg0, %c0_i32 : i32, i32
  }
  func.func @transform_2(%arg0: i32) -> (i32, i32) {
    %c0_i32 = arith.constant 0 : i32
    %c0_i32_0 = arith.constant 0 : i32
    %c0_i32_1 = arith.constant 0 : i32
    return %c0_i32, %c0_i32_0 : i32, i32
  }
  func.func @transform_3(%arg0: i32) -> (i32, i32) {
    %c0_i32 = arith.constant 0 : i32
    %c0_i32_0 = arith.constant 0 : i32
    %c0_i32_1 = arith.constant 0 : i32
    return %c0_i32, %c0_i32_0 : i32, i32
  }
  func.func @transform_4(%arg0: i32) -> (i32, i32) {
    %c0_i32 = arith.constant 0 : i32
    %c0_i32_0 = arith.constant 0 : i32
    %c0_i32_1 = arith.constant 0 : i32
    return %c0_i32, %c0_i32_0 : i32, i32
  }
  func.func @transform_5(%arg0: i32) -> (i32, i32) {
    %c0_i32 = arith.constant 0 : i32
    %c0_i32_0 = arith.constant 0 : i32
    %c0_i32_1 = arith.constant 0 : i32
    return %c0_i32, %c0_i32_0 : i32, i32
  }
  func.func @transform_6(%arg0: i32) -> (i32, i32) {
    %c0_i32 = arith.constant 0 : i32
    %c0_i32_0 = arith.constant 0 : i32
    %c0_i32_1 = arith.constant 0 : i32
    return %c0_i32, %c0_i32_0 : i32, i32
  }
  func.func @transform_7(%arg0: i32) -> (i32, i32) {
    %c0_i32 = arith.constant 0 : i32
    %c0_i32_0 = arith.constant 0 : i32
    %c0_i32_1 = arith.constant 0 : i32
    return %c0_i32, %c0_i32_0 : i32, i32
  }
  func.func @transform_8(%arg0: i32) -> (i32, i32) {
    %c0_i32 = arith.constant 0 : i32
    %c0_i32_0 = arith.constant 0 : i32
    %c0_i32_1 = arith.constant 0 : i32
    return %c0_i32, %c0_i32_0 : i32, i32
  }
  func.func @transform_9(%arg0: i32) -> (i32, i32) {
    %c0_i32 = arith.constant 0 : i32
    %c0_i32_0 = arith.constant 0 : i32
    %c0_i32_1 = arith.constant 0 : i32
    return %c0_i32, %c0_i32_0 : i32, i32
  }
  func.func @transform_10(%arg0: i32) -> (i32, i32) {
    %c0_i32 = arith.constant 0 : i32
    %c0_i32_0 = arith.constant 0 : i32
    return %arg0, %c0_i32 : i32, i32
  }
  func.func @transform_11(%arg0: i32) -> (i32, i32) {
    %c0_i32 = arith.constant 0 : i32
    %c0_i32_0 = arith.constant 0 : i32
    return %arg0, %c0_i32 : i32, i32
  }
  func.func @transform_12(%arg0: i32) -> (i32, i32) {
    %c0_i32 = arith.constant 0 : i32
    %c0_i32_0 = arith.constant 0 : i32
    return %arg0, %c0_i32 : i32, i32
  }
  func.func @transform_13(%arg0: i32) -> (i32, i32) {
    %c0_i32 = arith.constant 0 : i32
    %c0_i32_0 = arith.constant 0 : i32
    return %arg0, %c0_i32 : i32, i32
  }
  func.func @transform_14(%arg0: i32) -> (i32, i32) {
    %c0_i32 = arith.constant 0 : i32
    %c0_i32_0 = arith.constant 0 : i32
    return %arg0, %c0_i32 : i32, i32
  }
  func.func @transform_15(%arg0: i32) -> (i32, i32) {
    %c0_i32 = arith.constant 0 : i32
    %c0_i32_0 = arith.constant 0 : i32
    return %arg0, %c0_i32 : i32, i32
  }
}

</mosaic_0001>

<llo_original>
// kernel: idcm_nn_forward.4
$region0: #{idcm_nn_forward.4}
  #allocation0 [shape = 'u32[]', space=smem, size = 0x4, offset = 0x4, fixed_abs, tag = 'smem constant byte address 0x4 - core index']
  #allocation1 [shape = 'u32[72,128]{1,0:T(1,128)}', space=vmem, size = 0x9000, scoped, tag = 'internal scratch']
  #allocation2 [shape = 'f32[8,128]{1,0:T(8,128)}', space=vmem, size = 0x1000, scoped, tag = 'scratch operand']
  %s0 = inlined_call_operand.vmem [shape: bf16[8,128], index: 0, kind: input, shape index: {}]
  %s1 = inlined_call_operand.hbm [shape: bf16[128,128], index: 1, kind: input, shape index: {}]
  %s2 = inlined_call_operand.vmem [shape: f32[1,128], index: 2, kind: input, shape index: {}]
  %s3 = inlined_call_operand.hbm [shape: bf16[128,128], index: 3, kind: input, shape index: {}]
  %s4 = inlined_call_operand.vmem [shape: f32[1,128], index: 4, kind: input, shape index: {}]
  %s5 = inlined_call_operand.hbm [shape: bf16[128,128], index: 5, kind: input, shape index: {}]
  %s6 = inlined_call_operand.vmem [shape: f32[1,128], index: 6, kind: input, shape index: {}]
  %s7 = inlined_call_operand.vmem [shape: bf16[8,128], index: 7, kind: output, shape index: {}]
  %s8 = sld [smem:[#allocation0]]
  $region62: #{idcm_nn_forward.4} parent=0
    _
  %s10 = ssub.s32 1, %s8
  %s11 = scalar_select 0, %s10, %s8
  $region1: #{idcm_nn_forward.4} parent=0
    #allocation3 [shape = 'u8[32768]{0}', space=vmem, size = 0x8000, scoped, tag = 'input window, operand 1, single buffered']
    #allocation4 [shape = 's32[1]{0}', space=sflag, size = 0x4, scoped, tag = 'scoped memory for idcm_nn_forward.4']
    #allocation5 [shape = 'u8[32768]{0}', space=vmem, size = 0x8000, scoped, tag = 'input window, operand 3, single buffered']
    #allocation6 [shape = 's32[1]{0}', space=sflag, size = 0x4, scoped, tag = 'scoped memory for idcm_nn_forward.4']
    #allocation7 [shape = 'u8[32768]{0}', space=vmem, size = 0x8000, scoped, tag = 'input window, operand 5, single buffered']
    %12 = vsyncpa [#allocation4], 0
    %13 = vsyncpa [#allocation6], 0
    // Predicated region
    $region2: #{idcm_nn_forward.4} parent=1 // pred_check
      _
    $region3: #{idcm_nn_forward.4} parent=1 // pred_check_branch
      %15 = sbr.rel (0) target = $region5
    $region4: #{idcm_nn_forward.4} parent=1 // pred_region
      _
    $region5: #{idcm_nn_forward.4} parent=1 // pred_fallthru
      _
    // Predicated region
    $region6: #{idcm_nn_forward.4} parent=1 // pred_check
      _
    $region7: #{idcm_nn_forward.4} parent=1 // pred_check_branch
      %17 = sbr.rel (0) target = $region9
    $region8: #{idcm_nn_forward.4} parent=1 // pred_region
      %19 = vsyncadd [#allocation4], 0
      %s20 = sshll.u32 %s1, 4
      %s21 = int_to_ptr.hbm [resolvable:$true] %s20
      %s22 = sshll.u32 [#allocation3], 4
      %s23 = int_to_ptr.vmem [resolvable:$true] %s22
      %28 = dma.hbm_to_vmem [thread:$0]  %s21, 1024, %s23, [#allocation4], 64, 64, 4
    $region9: #{idcm_nn_forward.4} parent=1 // pred_fallthru
      _
    // Predicated region
    $region10: #{idcm_nn_forward.4} parent=1 // pred_check
      _
    $region11: #{idcm_nn_forward.4} parent=1 // pred_check_branch
      %30 = sbr.rel (0) target = $region13
    $region12: #{idcm_nn_forward.4} parent=1 // pred_region
      _
    $region13: #{idcm_nn_forward.4} parent=1 // pred_fallthru
      _
    // Predicated region
    $region14: #{idcm_nn_forward.4} parent=1 // pred_check
      _
    $region15: #{idcm_nn_forward.4} parent=1 // pred_check_branch
      %32 = sbr.rel (0) target = $region17
    $region16: #{idcm_nn_forward.4} parent=1 // pred_region
      %34 = vsyncadd [#allocation6], 0
      %s35 = sshll.u32 %s3, 4
      %s36 = int_to_ptr.hbm [resolvable:$true] %s35
      %s37 = sshll.u32 [#allocation5], 4
      %s38 = int_to_ptr.vmem [resolvable:$true] %s37
      %43 = dma.hbm_to_vmem [thread:$0]  %s36, 1024, %s38, [#allocation6], 64, 64, 4
    $region17: #{idcm_nn_forward.4} parent=1 // pred_fallthru
      _
    // Predicated region
    $region18: #{idcm_nn_forward.4} parent=1 // pred_check
      _
    $region19: #{idcm_nn_forward.4} parent=1 // pred_check_branch
      %45 = sbr.rel (0) target = $region21
    $region20: #{idcm_nn_forward.4} parent=1 // pred_region
      _
    $region21: #{idcm_nn_forward.4} parent=1 // pred_fallthru
      _
    // Predicated region
    $region22: #{idcm_nn_forward.4} parent=1 // pred_check
      _
    $region23: #{idcm_nn_forward.4} parent=1 // pred_check_branch
      %47 = sbr.rel (0) target = $region25
    $region24: #{idcm_nn_forward.4} parent=1 // pred_region
      %49 = vsyncadd [#allocation6], 0
      %s50 = sshll.u32 %s5, 4
      %s51 = int_to_ptr.hbm [resolvable:$true] %s50
      %s52 = sshll.u32 [#allocation7], 4
      %s53 = int_to_ptr.vmem [resolvable:$true] %s52
      %58 = dma.hbm_to_vmem [thread:$0]  %s51, 1024, %s53, [#allocation6], 64, 64, 4
    $region25: #{idcm_nn_forward.4} parent=1 // pred_fallthru
      _
    // Predicated region
    $region26: #{idcm_nn_forward.4} parent=1 // pred_check
      _
    $region27: #{idcm_nn_forward.4} parent=1 // pred_check_branch
      %60 = sbr.rel (0) target = $region29
    $region28: #{idcm_nn_forward.4} parent=1 // pred_region
      _
    $region29: #{idcm_nn_forward.4} parent=1 // pred_fallthru
      _
    // Predicated region
    $region30: #{idcm_nn_forward.4} parent=1 // pred_check
      _
    $region31: #{idcm_nn_forward.4} parent=1 // pred_check_branch
      %62 = sbr.rel (0) target = $region33
    $region32: #{idcm_nn_forward.4} parent=1 // pred_region
      %64 = dma.done [#allocation4], 1024
    $region33: #{idcm_nn_forward.4} parent=1 // pred_fallthru
      _
    // Predicated region
    $region34: #{idcm_nn_forward.4} parent=1 // pred_check
      _
    $region35: #{idcm_nn_forward.4} parent=1 // pred_check_branch
      %66 = sbr.rel (0) target = $region37
    $region36: #{idcm_nn_forward.4} parent=1 // pred_region
      %68 = dma.done [#allocation6], 1024
    $region37: #{idcm_nn_forward.4} parent=1 // pred_fallthru
      _
    // Predicated region
    $region38: #{idcm_nn_forward.4} parent=1 // pred_check
      _
    $region39: #{idcm_nn_forward.4} parent=1 // pred_check_branch
      %70 = sbr.rel (0) target = $region41
    $region40: #{idcm_nn_forward.4} parent=1 // pred_region
      %72 = dma.done [#allocation6], 1024
    $region41: #{idcm_nn_forward.4} parent=1 // pred_fallthru
      _
    %v73 = vld [vmem:[%s0] sm:$0xf]
    %v74 = vld [vmem:[#allocation3] sm:$0xf]
    %v75 = vld [vmem:[#allocation3 + $0x4] sm:$0xf]
    %v76 = vld [vmem:[#allocation3 + $0x8] sm:$0xf]
    %v77 = vld [vmem:[#allocation3 + $0xc] sm:$0xf]
    %v78 = vld [vmem:[#allocation3 + $0x10] sm:$0xf]
    %v79 = vld [vmem:[#allocation3 + $0x14] sm:$0xf]
    %v80 = vld [vmem:[#allocation3 + $0x18] sm:$0xf]
    %v81 = vld [vmem:[#allocation3 + $0x1c] sm:$0xf]
    %v82 = vld [vmem:[#allocation3 + $0x20] sm:$0xf]
    %v83 = vld [vmem:[#allocation3 + $0x24] sm:$0xf]
    %v84 = vld [vmem:[#allocation3 + $0x28] sm:$0xf]
    %v85 = vld [vmem:[#allocation3 + $0x2c] sm:$0xf]
    %v86 = vld [vmem:[#allocation3 + $0x30] sm:$0xf]
    %v87 = vld [vmem:[#allocation3 + $0x34] sm:$0xf]
    %v88 = vld [vmem:[#allocation3 + $0x38] sm:$0xf]
    %v89 = vld [vmem:[#allocation3 + $0x3c] sm:$0xf]
    %v106 = vunpack.c.l.b16 %v74
    %v107 = vunpack.c.l.b16 %v75
    %v108 = vunpack.c.l.b16 %v76
    %v109 = vunpack.c.l.b16 %v77
    %v110 = vunpack.c.l.b16 %v78
    %v111 = vunpack.c.l.b16 %v79
    %v112 = vunpack.c.l.b16 %v80
    %v113 = vunpack.c.l.b16 %v81
    %v114 = vunpack.c.l.b16 %v82
    %v115 = vunpack.c.l.b16 %v83
    %v116 = vunpack.c.l.b16 %v84
    %v117 = vunpack.c.l.b16 %v85
    %v118 = vunpack.c.l.b16 %v86
    %v119 = vunpack.c.l.b16 %v87
    %v120 = vunpack.c.l.b16 %v88
    %v121 = vunpack.c.l.b16 %v89
    %v122 = vpack.c.b16 %v107, %v106
    %v123 = vpack.c.b16 %v109, %v108
    %v124 = vpack.c.b16 %v111, %v110
    %v125 = vpack.c.b16 %v113, %v112
    %v126 = vpack.c.b16 %v115, %v114
    %v127 = vpack.c.b16 %v117, %v116
    %v128 = vpack.c.b16 %v119, %v118
    %v129 = vpack.c.b16 %v121, %v120
    %138 = vmatpush.bf16.msra.mxu0 %v129
    %139 = vmatpush.bf16.msra.mxu0 %v128
    %140 = vmatpush.bf16.msra.mxu0 %v127
    %141 = vmatpush.bf16.msra.mxu0 %v126
    %142 = vmatpush.bf16.msra.mxu0 %v125
    %143 = vmatpush.bf16.msra.mxu0 %v124
    %144 = vmatpush.bf16.msra.mxu0 %v123
    %145 = vmatpush.bf16.msra.mxu0 %v122
    %146 = vmatmul.bf16.gmra.mxu0 %v73
    %v147 = vpop.f32.mrf.mxu0
    %v148 = vadd.f32 0.0, %v147
    %v149 = vpop.f32.mrf.mxu0
    %150 = vdwg.mxu0
    %p151 = scmp.eq.s32.totalorder 0, 0
    // Predicated region
    $region42: #{idcm_nn_forward.4} parent=1 // pred_check
      %p152 = pneg %p151
    $region43: #{idcm_nn_forward.4} parent=1 // pred_check_branch
      %154 = sbr.rel (%p152) target = $region45
    $region44: #{idcm_nn_forward.4} parent=1 // pred_region
      %v155 = vld [vmem:[%s2] sm:$0x1]
      %v157 = vperm.slane %v155, 0
      %v159 = vadd.f32 %v148, %v157
      %160 = vst [vmem:[#allocation2] sm:$0xff] %v159
    $region45: #{idcm_nn_forward.4} parent=1 // pred_fallthru
      _
    %p161 = scmp.gt.s32.totalorder 0, 0
    // Predicated region
    $region46: #{idcm_nn_forward.4} parent=1 // pred_check
      %p162 = pneg %p161
    $region47: #{idcm_nn_forward.4} parent=1 // pred_check_branch
      %164 = sbr.rel (%p162) target = $region49
    $region48: #{idcm_nn_forward.4} parent=1 // pred_region
      %v165 = vld [vmem:[#allocation2] sm:$0xff]
      %v166 = vadd.f32 %v165, %v148
      %167 = vst [vmem:[#allocation2] sm:$0xff] %v166
    $region49: #{idcm_nn_forward.4} parent=1 // pred_fallthru
      _
    // Predicated region
    $region50: #{idcm_nn_forward.4} parent=1 // pred_check
      %p168 = pneg %p151
    $region51: #{idcm_nn_forward.4} parent=1 // pred_check_branch
      %170 = sbr.rel (%p168) target = $region53
    $region52: #{idcm_nn_forward.4} parent=1 // pred_region
      %v171 = vld [vmem:[#allocation2] sm:$0xff]
      %v172 = vtanh.pop %v171
      %v173 = vpack.c.bf16 %v172, %v172
      %v174 = vld [vmem:[#allocation5] sm:$0xf]
      %v175 = vld [vmem:[#allocation5 + $0x4] sm:$0xf]
      %v176 = vld [vmem:[#allocation5 + $0x8] sm:$0xf]
      %v177 = vld [vmem:[#allocation5 + $0xc] sm:$0xf]
      %v178 = vld [vmem:[#allocation5 + $0x10] sm:$0xf]
      %v179 = vld [vmem:[#allocation5 + $0x14] sm:$0xf]
      %v180 = vld [vmem:[#allocation5 + $0x18] sm:$0xf]
      %v181 = vld [vmem:[#allocation5 + $0x1c] sm:$0xf]
      %v182 = vld [vmem:[#allocation5 + $0x20] sm:$0xf]
      %v183 = vld [vmem:[#allocation5 + $0x24] sm:$0xf]
      %v184 = vld [vmem:[#allocation5 + $0x28] sm:$0xf]
      %v185 = vld [vmem:[#allocation5 + $0x2c] sm:$0xf]
      %v186 = vld [vmem:[#allocation5 + $0x30] sm:$0xf]
      %v187 = vld [vmem:[#allocation5 + $0x34] sm:$0xf]
      %v188 = vld [vmem:[#allocation5 + $0x38] sm:$0xf]
      %v189 = vld [vmem:[#allocation5 + $0x3c] sm:$0xf]
      %v190 = vld [vmem:[%s4] sm:$0x1]
      %v192 = vperm.slane %v190, 0
      %v210 = vunpack.c.l.b16 %v174
      %v211 = vunpack.c.l.b16 %v175
      %v212 = vunpack.c.l.b16 %v176
      %v213 = vunpack.c.l.b16 %v177
      %v214 = vunpack.c.l.b16 %v178
      %v215 = vunpack.c.l.b16 %v179
      %v216 = vunpack.c.l.b16 %v180
      %v217 = vunpack.c.l.b16 %v181
      %v218 = vunpack.c.l.b16 %v182
      %v219 = vunpack.c.l.b16 %v183
      %v220 = vunpack.c.l.b16 %v184
      %v221 = vunpack.c.l.b16 %v185
      %v222 = vunpack.c.l.b16 %v186
      %v223 = vunpack.c.l.b16 %v187
      %v224 = vunpack.c.l.b16 %v188
      %v225 = vunpack.c.l.b16 %v189
      %v226 = vpack.c.b16 %v211, %v210
      %v227 = vpack.c.b16 %v213, %v212
      %v228 = vpack.c.b16 %v215, %v214
      %v229 = vpack.c.b16 %v217, %v216
      %v230 = vpack.c.b16 %v219, %v218
      %v231 = vpack.c.b16 %v221, %v220
      %v232 = vpack.c.b16 %v223, %v222
      %v233 = vpack.c.b16 %v225, %v224
      %242 = vmatpush.bf16.msra.mxu0 %v233
      %243 = vmatpush.bf16.msra.mxu0 %v232
      %244 = vmatpush.bf16.msra.mxu0 %v231
      %245 = vmatpush.bf16.msra.mxu0 %v230
      %246 = vmatpush.bf16.msra.mxu0 %v229
      %247 = vmatpush.bf16.msra.mxu0 %v228
      %248 = vmatpush.bf16.msra.mxu0 %v227
      %249 = vmatpush.bf16.msra.mxu0 %v226
      %250 = vmatmul.bf16.gmra.mxu0 %v173
      %v251 = vpop.f32.mrf.mxu0
      %v252 = vadd.f32 %v192, %v251
      %v253 = vpop.f32.mrf.mxu0
      %254 = vdwg.mxu0
      %v255 = vtanh.pop %v252
      %v256 = vpack.c.bf16 %v255, %v255
      %v257 = vld [vmem:[#allocation7] sm:$0xf]
      %v258 = vld [vmem:[#allocation7 + $0x4] sm:$0xf]
      %v259 = vld [vmem:[#allocation7 + $0x8] sm:$0xf]
      %v260 = vld [vmem:[#allocation7 + $0xc] sm:$0xf]
      %v261 = vld [vmem:[#allocation7 + $0x10] sm:$0xf]
      %v262 = vld [vmem:[#allocation7 + $0x14] sm:$0xf]
      %v263 = vld [vmem:[#allocation7 + $0x18] sm:$0xf]
      %v264 = vld [vmem:[#allocation7 + $0x1c] sm:$0xf]
      %v265 = vld [vmem:[#allocation7 + $0x20] sm:$0xf]
      %v266 = vld [vmem:[#allocation7 + $0x24] sm:$0xf]
      %v267 = vld [vmem:[#allocation7 + $0x28] sm:$0xf]
      %v268 = vld [vmem:[#allocation7 + $0x2c] sm:$0xf]
      %v269 = vld [vmem:[#allocation7 + $0x30] sm:$0xf]
      %v270 = vld [vmem:[#allocation7 + $0x34] sm:$0xf]
      %v271 = vld [vmem:[#allocation7 + $0x38] sm:$0xf]
      %v272 = vld [vmem:[#allocation7 + $0x3c] sm:$0xf]
      %v273 = vld [vmem:[%s6] sm:$0x1]
      %v275 = vperm.slane %v273, 0
      %v293 = vunpack.c.l.b16 %v257
      %v294 = vunpack.c.l.b16 %v258
      %v295 = vunpack.c.l.b16 %v259
      %v296 = vunpack.c.l.b16 %v260
      %v297 = vunpack.c.l.b16 %v261
      %v298 = vunpack.c.l.b16 %v262
      %v299 = vunpack.c.l.b16 %v263
      %v300 = vunpack.c.l.b16 %v264
      %v301 = vunpack.c.l.b16 %v265
      %v302 = vunpack.c.l.b16 %v266
      %v303 = vunpack.c.l.b16 %v267
      %v304 = vunpack.c.l.b16 %v268
      %v305 = vunpack.c.l.b16 %v269
      %v306 = vunpack.c.l.b16 %v270
      %v307 = vunpack.c.l.b16 %v271
      %v308 = vunpack.c.l.b16 %v272
      %v309 = vpack.c.b16 %v294, %v293
      %v310 = vpack.c.b16 %v296, %v295
      %v311 = vpack.c.b16 %v298, %v297
      %v312 = vpack.c.b16 %v300, %v299
      %v313 = vpack.c.b16 %v302, %v301
      %v314 = vpack.c.b16 %v304, %v303
      %v315 = vpack.c.b16 %v306, %v305
      %v316 = vpack.c.b16 %v308, %v307
      %325 = vmatpush.bf16.msra.mxu0 %v316
      %326 = vmatpush.bf16.msra.mxu0 %v315
      %327 = vmatpush.bf16.msra.mxu0 %v314
      %328 = vmatpush.bf16.msra.mxu0 %v313
      %329 = vmatpush.bf16.msra.mxu0 %v312
      %330 = vmatpush.bf16.msra.mxu0 %v311
      %331 = vmatpush.bf16.msra.mxu0 %v310
      %332 = vmatpush.bf16.msra.mxu0 %v309
      %333 = vmatmul.bf16.gmra.mxu0 %v256
      %v334 = vpop.f32.mrf.mxu0
      %v335 = vadd.f32 %v275, %v334
      %v336 = vpop.f32.mrf.mxu0
      %337 = vdwg.mxu0
      %v338 = vtanh.pop %v335
      %v339 = vpack.c.bf16 %v338, %v338
      %340 = vst [vmem:[%s7] sm:$0xf] %v339
    $region53: #{idcm_nn_forward.4} parent=1 // pred_fallthru
      _
    // Predicated region
    $region54: #{idcm_nn_forward.4} parent=1 // pred_check
      _
    $region55: #{idcm_nn_forward.4} parent=1 // pred_check_branch
      %342 = sbr.rel (0) target = $region57
    $region56: #{idcm_nn_forward.4} parent=1 // pred_region
      _
    $region57: #{idcm_nn_forward.4} parent=1 // pred_fallthru
      _
    // Predicated region
    $region58: #{idcm_nn_forward.4} parent=1 // pred_check
      _
    $region59: #{idcm_nn_forward.4} parent=1 // pred_check_branch
      %344 = sbr.rel (0) target = $region61
    $region60: #{idcm_nn_forward.4} parent=1 // pred_region
      _
    $region61: #{idcm_nn_forward.4} parent=1 // pred_fallthru
      _
    %345 = vsyncpa [#allocation4], 1
    %346 = vsyncpa [#allocation6], 1

// kernel: idcm_nn_forward.3
$region0: #{idcm_nn_forward.3}
  #allocation0 [shape = 'u32[]', space=smem, size = 0x4, offset = 0x4, fixed_abs, tag = 'smem constant byte address 0x4 - core index']
  #allocation1 [shape = 'u32[72,128]{1,0:T(1,128)}', space=vmem, size = 0x9000, scoped, tag = 'internal scratch']
  #allocation2 [shape = 'f32[8,128]{1,0:T(8,128)}', space=vmem, size = 0x1000, scoped, tag = 'scratch operand']
  %s0 = inlined_call_operand.vmem [shape: bf16[8,256], index: 0, kind: input, shape index: {}]
  %s1 = inlined_call_operand.hbm [shape: bf16[256,128], index: 1, kind: input, shape index: {}]
  %s2 = inlined_call_operand.vmem [shape: f32[1,128], index: 2, kind: input, shape index: {}]
  %s3 = inlined_call_operand.hbm [shape: bf16[128,128], index: 3, kind: input, shape index: {}]
  %s4 = inlined_call_operand.vmem [shape: f32[1,128], index: 4, kind: input, shape index: {}]
  %s5 = inlined_call_operand.hbm [shape: bf16[128,128], index: 5, kind: input, shape index: {}]
  %s6 = inlined_call_operand.vmem [shape: f32[1,128], index: 6, kind: input, shape index: {}]
  %s7 = inlined_call_operand.vmem [shape: bf16[8,128], index: 7, kind: output, shape index: {}]
  %s8 = sld [smem:[#allocation0]]
  $region62: #{idcm_nn_forward.3} parent=0
    _
  %s10 = ssub.s32 1, %s8
  %s11 = scalar_select 0, %s10, %s8
  $region1: #{idcm_nn_forward.3} parent=0
    #allocation3 [shape = 'u8[65536]{0}', space=vmem, size = 0x10000, scoped, tag = 'input window, operand 1, single buffered']
    #allocation4 [shape = 's32[1]{0}', space=sflag, size = 0x4, scoped, tag = 'scoped memory for idcm_nn_forward.3']
    #allocation5 [shape = 'u8[32768]{0}', space=vmem, size = 0x8000, scoped, tag = 'input window, operand 3, single buffered']
    #allocation6 [shape = 's32[1]{0}', space=sflag, size = 0x4, scoped, tag = 'scoped memory for idcm_nn_forward.3']
    #allocation7 [shape = 'u8[32768]{0}', space=vmem, size = 0x8000, scoped, tag = 'input window, operand 5, single buffered']
    %12 = vsyncpa [#allocation4], 0
    %13 = vsyncpa [#allocation6], 0
    // Predicated region
    $region2: #{idcm_nn_forward.3} parent=1 // pred_check
      _
    $region3: #{idcm_nn_forward.3} parent=1 // pred_check_branch
      %15 = sbr.rel (0) target = $region5
    $region4: #{idcm_nn_forward.3} parent=1 // pred_region
      _
    $region5: #{idcm_nn_forward.3} parent=1 // pred_fallthru
      _
    // Predicated region
    $region6: #{idcm_nn_forward.3} parent=1 // pred_check
      _
    $region7: #{idcm_nn_forward.3} parent=1 // pred_check_branch
      %17 = sbr.rel (0) target = $region9
    $region8: #{idcm_nn_forward.3} parent=1 // pred_region
      %19 = vsyncadd [#allocation4], 0
      %s20 = sshll.u32 %s1, 4
      %s21 = int_to_ptr.hbm [resolvable:$true] %s20
      %s22 = sshll.u32 [#allocation3], 4
      %s23 = int_to_ptr.vmem [resolvable:$true] %s22
      %28 = dma.hbm_to_vmem [thread:$0]  %s21, 2048, %s23, [#allocation4], 64, 64, 4
    $region9: #{idcm_nn_forward.3} parent=1 // pred_fallthru
      _
    // Predicated region
    $region10: #{idcm_nn_forward.3} parent=1 // pred_check
      _
    $region11: #{idcm_nn_forward.3} parent=1 // pred_check_branch
      %30 = sbr.rel (0) target = $region13
    $region12: #{idcm_nn_forward.3} parent=1 // pred_region
      _
    $region13: #{idcm_nn_forward.3} parent=1 // pred_fallthru
      _
    // Predicated region
    $region14: #{idcm_nn_forward.3} parent=1 // pred_check
      _
    $region15: #{idcm_nn_forward.3} parent=1 // pred_check_branch
      %32 = sbr.rel (0) target = $region17
    $region16: #{idcm_nn_forward.3} parent=1 // pred_region
      %34 = vsyncadd [#allocation6], 0
      %s35 = sshll.u32 %s3, 4
      %s36 = int_to_ptr.hbm [resolvable:$true] %s35
      %s37 = sshll.u32 [#allocation5], 4
      %s38 = int_to_ptr.vmem [resolvable:$true] %s37
      %43 = dma.hbm_to_vmem [thread:$0]  %s36, 1024, %s38, [#allocation6], 64, 64, 4
    $region17: #{idcm_nn_forward.3} parent=1 // pred_fallthru
      _
    // Predicated region
    $region18: #{idcm_nn_forward.3} parent=1 // pred_check
      _
    $region19: #{idcm_nn_forward.3} parent=1 // pred_check_branch
      %45 = sbr.rel (0) target = $region21
    $region20: #{idcm_nn_forward.3} parent=1 // pred_region
      _
    $region21: #{idcm_nn_forward.3} parent=1 // pred_fallthru
      _
    // Predicated region
    $region22: #{idcm_nn_forward.3} parent=1 // pred_check
      _
    $region23: #{idcm_nn_forward.3} parent=1 // pred_check_branch
      %47 = sbr.rel (0) target = $region25
    $region24: #{idcm_nn_forward.3} parent=1 // pred_region
      %49 = vsyncadd [#allocation6], 0
      %s50 = sshll.u32 %s5, 4
      %s51 = int_to_ptr.hbm [resolvable:$true] %s50
      %s52 = sshll.u32 [#allocation7], 4
      %s53 = int_to_ptr.vmem [resolvable:$true] %s52
      %58 = dma.hbm_to_vmem [thread:$0]  %s51, 1024, %s53, [#allocation6], 64, 64, 4
    $region25: #{idcm_nn_forward.3} parent=1 // pred_fallthru
      _
    // Predicated region
    $region26: #{idcm_nn_forward.3} parent=1 // pred_check
      _
    $region27: #{idcm_nn_forward.3} parent=1 // pred_check_branch
      %60 = sbr.rel (0) target = $region29
    $region28: #{idcm_nn_forward.3} parent=1 // pred_region
      _
    $region29: #{idcm_nn_forward.3} parent=1 // pred_fallthru
      _
    // Predicated region
    $region30: #{idcm_nn_forward.3} parent=1 // pred_check
      _
    $region31: #{idcm_nn_forward.3} parent=1 // pred_check_branch
      %62 = sbr.rel (0) target = $region33
    $region32: #{idcm_nn_forward.3} parent=1 // pred_region
      %64 = dma.done [#allocation4], 2048
    $region33: #{idcm_nn_forward.3} parent=1 // pred_fallthru
      _
    // Predicated region
    $region34: #{idcm_nn_forward.3} parent=1 // pred_check
      _
    $region35: #{idcm_nn_forward.3} parent=1 // pred_check_branch
      %66 = sbr.rel (0) target = $region37
    $region36: #{idcm_nn_forward.3} parent=1 // pred_region
      %68 = dma.done [#allocation6], 1024
    $region37: #{idcm_nn_forward.3} parent=1 // pred_fallthru
      _
    // Predicated region
    $region38: #{idcm_nn_forward.3} parent=1 // pred_check
      _
    $region39: #{idcm_nn_forward.3} parent=1 // pred_check_branch
      %70 = sbr.rel (0) target = $region41
    $region40: #{idcm_nn_forward.3} parent=1 // pred_region
      %72 = dma.done [#allocation6], 1024
    $region41: #{idcm_nn_forward.3} parent=1 // pred_fallthru
      _
    %v73 = vld [vmem:[%s0] sm:$0xff]
    %v74 = vld [vmem:[#allocation3] sm:$0xf]
    %v75 = vld [vmem:[#allocation3 + $0x4] sm:$0xf]
    %v76 = vld [vmem:[#allocation3 + $0x8] sm:$0xf]
    %v77 = vld [vmem:[#allocation3 + $0xc] sm:$0xf]
    %v78 = vld [vmem:[#allocation3 + $0x10] sm:$0xf]
    %v79 = vld [vmem:[#allocation3 + $0x14] sm:$0xf]
    %v80 = vld [vmem:[#allocation3 + $0x18] sm:$0xf]
    %v81 = vld [vmem:[#allocation3 + $0x1c] sm:$0xf]
    %v82 = vld [vmem:[#allocation3 + $0x20] sm:$0xf]
    %v83 = vld [vmem:[#allocation3 + $0x24] sm:$0xf]
    %v84 = vld [vmem:[#allocation3 + $0x28] sm:$0xf]
    %v85 = vld [vmem:[#allocation3 + $0x2c] sm:$0xf]
    %v86 = vld [vmem:[#allocation3 + $0x30] sm:$0xf]
    %v87 = vld [vmem:[#allocation3 + $0x34] sm:$0xf]
    %v88 = vld [vmem:[#allocation3 + $0x38] sm:$0xf]
    %v89 = vld [vmem:[#allocation3 + $0x3c] sm:$0xf]
    %v90 = vld [vmem:[#allocation3 + $0x40] sm:$0xf]
    %v91 = vld [vmem:[#allocation3 + $0x44] sm:$0xf]
    %v92 = vld [vmem:[#allocation3 + $0x48] sm:$0xf]
    %v93 = vld [vmem:[#allocation3 + $0x4c] sm:$0xf]
    %v94 = vld [vmem:[#allocation3 + $0x50] sm:$0xf]
    %v95 = vld [vmem:[#allocation3 + $0x54] sm:$0xf]
    %v96 = vld [vmem:[#allocation3 + $0x58] sm:$0xf]
    %v97 = vld [vmem:[#allocation3 + $0x5c] sm:$0xf]
    %v98 = vld [vmem:[#allocation3 + $0x60] sm:$0xf]
    %v99 = vld [vmem:[#allocation3 + $0x64] sm:$0xf]
    %v100 = vld [vmem:[#allocation3 + $0x68] sm:$0xf]
    %v101 = vld [vmem:[#allocation3 + $0x6c] sm:$0xf]
    %v102 = vld [vmem:[#allocation3 + $0x70] sm:$0xf]
    %v103 = vld [vmem:[#allocation3 + $0x74] sm:$0xf]
    %v104 = vld [vmem:[#allocation3 + $0x78] sm:$0xf]
    %v105 = vld [vmem:[#allocation3 + $0x7c] sm:$0xf]
    %v107 = vunpack.c.l.b16 %v73
    %v108 = vunpack.c.h.b16 %v73
    %v109 = vpack.c.b16 %v107, %v107
    %v110 = vpack.c.b16 %v108, %v108
    %v145 = vunpack.c.l.b16 %v74
    %v146 = vunpack.c.l.b16 %v75
    %v147 = vunpack.c.l.b16 %v76
    %v148 = vunpack.c.l.b16 %v77
    %v149 = vunpack.c.l.b16 %v78
    %v150 = vunpack.c.l.b16 %v79
    %v151 = vunpack.c.l.b16 %v80
    %v152 = vunpack.c.l.b16 %v81
    %v153 = vunpack.c.l.b16 %v82
    %v154 = vunpack.c.l.b16 %v83
    %v155 = vunpack.c.l.b16 %v84
    %v156 = vunpack.c.l.b16 %v85
    %v157 = vunpack.c.l.b16 %v86
    %v158 = vunpack.c.l.b16 %v87
    %v159 = vunpack.c.l.b16 %v88
    %v160 = vunpack.c.l.b16 %v89
    %v161 = vunpack.c.l.b16 %v90
    %v162 = vunpack.c.l.b16 %v91
    %v163 = vunpack.c.l.b16 %v92
    %v164 = vunpack.c.l.b16 %v93
    %v165 = vunpack.c.l.b16 %v94
    %v166 = vunpack.c.l.b16 %v95
    %v167 = vunpack.c.l.b16 %v96
    %v168 = vunpack.c.l.b16 %v97
    %v169 = vunpack.c.l.b16 %v98
    %v170 = vunpack.c.l.b16 %v99
    %v171 = vunpack.c.l.b16 %v100
    %v172 = vunpack.c.l.b16 %v101
    %v173 = vunpack.c.l.b16 %v102
    %v174 = vunpack.c.l.b16 %v103
    %v175 = vunpack.c.l.b16 %v104
    %v176 = vunpack.c.l.b16 %v105
    %v177 = vpack.c.b16 %v146, %v145
    %v178 = vpack.c.b16 %v148, %v147
    %v179 = vpack.c.b16 %v150, %v149
    %v180 = vpack.c.b16 %v152, %v151
    %v181 = vpack.c.b16 %v154, %v153
    %v182 = vpack.c.b16 %v156, %v155
    %v183 = vpack.c.b16 %v158, %v157
    %v184 = vpack.c.b16 %v160, %v159
    %v185 = vpack.c.b16 %v162, %v161
    %v186 = vpack.c.b16 %v164, %v163
    %v187 = vpack.c.b16 %v166, %v165
    %v188 = vpack.c.b16 %v168, %v167
    %v189 = vpack.c.b16 %v170, %v169
    %v190 = vpack.c.b16 %v172, %v171
    %v191 = vpack.c.b16 %v174, %v173
    %v192 = vpack.c.b16 %v176, %v175
    %209 = vmatpush.bf16.msra.mxu0 %v184
    %210 = vmatpush.bf16.msra.mxu0 %v183
    %211 = vmatpush.bf16.msra.mxu0 %v182
    %212 = vmatpush.bf16.msra.mxu0 %v181
    %213 = vmatpush.bf16.msra.mxu0 %v180
    %214 = vmatpush.bf16.msra.mxu0 %v179
    %215 = vmatpush.bf16.msra.mxu0 %v178
    %216 = vmatpush.bf16.msra.mxu0 %v177
    %217 = vmatmul.bf16.gmra.mxu0 %v109
    %v218 = vpop.f32.mrf.mxu0
    %v219 = vadd.f32 0.0, %v218
    %v220 = vpop.f32.mrf.mxu0
    %221 = vdwg.mxu0
    %222 = vmatpush.bf16.msra.mxu0 %v192
    %223 = vmatpush.bf16.msra.mxu0 %v191
    %224 = vmatpush.bf16.msra.mxu0 %v190
    %225 = vmatpush.bf16.msra.mxu0 %v189
    %226 = vmatpush.bf16.msra.mxu0 %v188
    %227 = vmatpush.bf16.msra.mxu0 %v187
    %228 = vmatpush.bf16.msra.mxu0 %v186
    %229 = vmatpush.bf16.msra.mxu0 %v185
    %230 = vmatmul.bf16.gmra.mxu0 %v110
    %v231 = vpop.f32.mrf.mxu0
    %v232 = vadd.f32 %v219, %v231
    %v233 = vpop.f32.mrf.mxu0
    %234 = vdwg.mxu0
    %p235 = scmp.eq.s32.totalorder 0, 0
    // Predicated region
    $region42: #{idcm_nn_forward.3} parent=1 // pred_check
      %p236 = pneg %p235
    $region43: #{idcm_nn_forward.3} parent=1 // pred_check_branch
      %238 = sbr.rel (%p236) target = $region45
    $region44: #{idcm_nn_forward.3} parent=1 // pred_region
      %v239 = vld [vmem:[%s2] sm:$0x1]
      %v241 = vperm.slane %v239, 0
      %v243 = vadd.f32 %v232, %v241
      %244 = vst [vmem:[#allocation2] sm:$0xff] %v243
    $region45: #{idcm_nn_forward.3} parent=1 // pred_fallthru
      _
    %p245 = scmp.gt.s32.totalorder 0, 0
    // Predicated region
    $region46: #{idcm_nn_forward.3} parent=1 // pred_check
      %p246 = pneg %p245
    $region47: #{idcm_nn_forward.3} parent=1 // pred_check_branch
      %248 = sbr.rel (%p246) target = $region49
    $region48: #{idcm_nn_forward.3} parent=1 // pred_region
      %v249 = vld [vmem:[#allocation2] sm:$0xff]
      %v250 = vadd.f32 %v249, %v232
      %251 = vst [vmem:[#allocation2] sm:$0xff] %v250
    $region49: #{idcm_nn_forward.3} parent=1 // pred_fallthru
      _
    // Predicated region
    $region50: #{idcm_nn_forward.3} parent=1 // pred_check
      %p252 = pneg %p235
    $region51: #{idcm_nn_forward.3} parent=1 // pred_check_branch
      %254 = sbr.rel (%p252) target = $region53
    $region52: #{idcm_nn_forward.3} parent=1 // pred_region
      %v255 = vld [vmem:[#allocation2] sm:$0xff]
      %v256 = vtanh.pop %v255
      %v257 = vpack.c.bf16 %v256, %v256
      %v258 = vld [vmem:[#allocation5] sm:$0xf]
      %v259 = vld [vmem:[#allocation5 + $0x4] sm:$0xf]
      %v260 = vld [vmem:[#allocation5 + $0x8] sm:$0xf]
      %v261 = vld [vmem:[#allocation5 + $0xc] sm:$0xf]
      %v262 = vld [vmem:[#allocation5 + $0x10] sm:$0xf]
      %v263 = vld [vmem:[#allocation5 + $0x14] sm:$0xf]
      %v264 = vld [vmem:[#allocation5 + $0x18] sm:$0xf]
      %v265 = vld [vmem:[#allocation5 + $0x1c] sm:$0xf]
      %v266 = vld [vmem:[#allocation5 + $0x20] sm:$0xf]
      %v267 = vld [vmem:[#allocation5 + $0x24] sm:$0xf]
      %v268 = vld [vmem:[#allocation5 + $0x28] sm:$0xf]
      %v269 = vld [vmem:[#allocation5 + $0x2c] sm:$0xf]
      %v270 = vld [vmem:[#allocation5 + $0x30] sm:$0xf]
      %v271 = vld [vmem:[#allocation5 + $0x34] sm:$0xf]
      %v272 = vld [vmem:[#allocation5 + $0x38] sm:$0xf]
      %v273 = vld [vmem:[#allocation5 + $0x3c] sm:$0xf]
      %v274 = vld [vmem:[%s4] sm:$0x1]
      %v276 = vperm.slane %v274, 0
      %v294 = vunpack.c.l.b16 %v258
      %v295 = vunpack.c.l.b16 %v259
      %v296 = vunpack.c.l.b16 %v260
      %v297 = vunpack.c.l.b16 %v261
      %v298 = vunpack.c.l.b16 %v262
      %v299 = vunpack.c.l.b16 %v263
      %v300 = vunpack.c.l.b16 %v264
      %v301 = vunpack.c.l.b16 %v265
      %v302 = vunpack.c.l.b16 %v266
      %v303 = vunpack.c.l.b16 %v267
      %v304 = vunpack.c.l.b16 %v268
      %v305 = vunpack.c.l.b16 %v269
      %v306 = vunpack.c.l.b16 %v270
      %v307 = vunpack.c.l.b16 %v271
      %v308 = vunpack.c.l.b16 %v272
      %v309 = vunpack.c.l.b16 %v273
      %v310 = vpack.c.b16 %v295, %v294
      %v311 = vpack.c.b16 %v297, %v296
      %v312 = vpack.c.b16 %v299, %v298
      %v313 = vpack.c.b16 %v301, %v300
      %v314 = vpack.c.b16 %v303, %v302
      %v315 = vpack.c.b16 %v305, %v304
      %v316 = vpack.c.b16 %v307, %v306
      %v317 = vpack.c.b16 %v309, %v308
      %326 = vmatpush.bf16.msra.mxu0 %v317
      %327 = vmatpush.bf16.msra.mxu0 %v316
      %328 = vmatpush.bf16.msra.mxu0 %v315
      %329 = vmatpush.bf16.msra.mxu0 %v314
      %330 = vmatpush.bf16.msra.mxu0 %v313
      %331 = vmatpush.bf16.msra.mxu0 %v312
      %332 = vmatpush.bf16.msra.mxu0 %v311
      %333 = vmatpush.bf16.msra.mxu0 %v310
      %334 = vmatmul.bf16.gmra.mxu0 %v257
      %v335 = vpop.f32.mrf.mxu0
      %v336 = vadd.f32 %v276, %v335
      %v337 = vpop.f32.mrf.mxu0
      %338 = vdwg.mxu0
      %v339 = vtanh.pop %v336
      %v340 = vpack.c.bf16 %v339, %v339
      %v341 = vld [vmem:[#allocation7] sm:$0xf]
      %v342 = vld [vmem:[#allocation7 + $0x4] sm:$0xf]
      %v343 = vld [vmem:[#allocation7 + $0x8] sm:$0xf]
      %v344 = vld [vmem:[#allocation7 + $0xc] sm:$0xf]
      %v345 = vld [vmem:[#allocation7 + $0x10] sm:$0xf]
      %v346 = vld [vmem:[#allocation7 + $0x14] sm:$0xf]
      %v347 = vld [vmem:[#allocation7 + $0x18] sm:$0xf]
      %v348 = vld [vmem:[#allocation7 + $0x1c] sm:$0xf]
      %v349 = vld [vmem:[#allocation7 + $0x20] sm:$0xf]
      %v350 = vld [vmem:[#allocation7 + $0x24] sm:$0xf]
      %v351 = vld [vmem:[#allocation7 + $0x28] sm:$0xf]
      %v352 = vld [vmem:[#allocation7 + $0x2c] sm:$0xf]
      %v353 = vld [vmem:[#allocation7 + $0x30] sm:$0xf]
      %v354 = vld [vmem:[#allocation7 + $0x34] sm:$0xf]
      %v355 = vld [vmem:[#allocation7 + $0x38] sm:$0xf]
      %v356 = vld [vmem:[#allocation7 + $0x3c] sm:$0xf]
      %v357 = vld [vmem:[%s6] sm:$0x1]
      %v359 = vperm.slane %v357, 0
      %v377 = vunpack.c.l.b16 %v341
      %v378 = vunpack.c.l.b16 %v342
      %v379 = vunpack.c.l.b16 %v343
      %v380 = vunpack.c.l.b16 %v344
      %v381 = vunpack.c.l.b16 %v345
      %v382 = vunpack.c.l.b16 %v346
      %v383 = vunpack.c.l.b16 %v347
      %v384 = vunpack.c.l.b16 %v348
      %v385 = vunpack.c.l.b16 %v349
      %v386 = vunpack.c.l.b16 %v350
      %v387 = vunpack.c.l.b16 %v351
      %v388 = vunpack.c.l.b16 %v352
      %v389 = vunpack.c.l.b16 %v353
      %v390 = vunpack.c.l.b16 %v354
      %v391 = vunpack.c.l.b16 %v355
      %v392 = vunpack.c.l.b16 %v356
      %v393 = vpack.c.b16 %v378, %v377
      %v394 = vpack.c.b16 %v380, %v379
      %v395 = vpack.c.b16 %v382, %v381
      %v396 = vpack.c.b16 %v384, %v383
      %v397 = vpack.c.b16 %v386, %v385
      %v398 = vpack.c.b16 %v388, %v387
      %v399 = vpack.c.b16 %v390, %v389
      %v400 = vpack.c.b16 %v392, %v391
      %409 = vmatpush.bf16.msra.mxu0 %v400
      %410 = vmatpush.bf16.msra.mxu0 %v399
      %411 = vmatpush.bf16.msra.mxu0 %v398
      %412 = vmatpush.bf16.msra.mxu0 %v397
      %413 = vmatpush.bf16.msra.mxu0 %v396
      %414 = vmatpush.bf16.msra.mxu0 %v395
      %415 = vmatpush.bf16.msra.mxu0 %v394
      %416 = vmatpush.bf16.msra.mxu0 %v393
      %417 = vmatmul.bf16.gmra.mxu0 %v340
      %v418 = vpop.f32.mrf.mxu0
      %v419 = vadd.f32 %v359, %v418
      %v420 = vpop.f32.mrf.mxu0
      %421 = vdwg.mxu0
      %v422 = vtanh.pop %v419
      %v423 = vpack.c.bf16 %v422, %v422
      %424 = vst [vmem:[%s7] sm:$0xf] %v423
    $region53: #{idcm_nn_forward.3} parent=1 // pred_fallthru
      _
    // Predicated region
    $region54: #{idcm_nn_forward.3} parent=1 // pred_check
      _
    $region55: #{idcm_nn_forward.3} parent=1 // pred_check_branch
      %426 = sbr.rel (0) target = $region57
    $region56: #{idcm_nn_forward.3} parent=1 // pred_region
      _
    $region57: #{idcm_nn_forward.3} parent=1 // pred_fallthru
      _
    // Predicated region
    $region58: #{idcm_nn_forward.3} parent=1 // pred_check
      _
    $region59: #{idcm_nn_forward.3} parent=1 // pred_check_branch
      %428 = sbr.rel (0) target = $region61
    $region60: #{idcm_nn_forward.3} parent=1 // pred_region
      _
    $region61: #{idcm_nn_forward.3} parent=1 // pred_fallthru
      _
    %429 = vsyncpa [#allocation4], 1
    %430 = vsyncpa [#allocation6], 1

// kernel: idcm_nn_forward.5
$region0: #{idcm_nn_forward.5}
  #allocation0 [shape = 'u32[]', space=smem, size = 0x4, offset = 0x4, fixed_abs, tag = 'smem constant byte address 0x4 - core index']
  #allocation1 [shape = 'u32[72,128]{1,0:T(1,128)}', space=vmem, size = 0x9000, scoped, tag = 'internal scratch']
  %s0 = inlined_call_operand.vmem [shape: bf16[8,128], index: 0, kind: input, shape index: {}]
  %s1 = inlined_call_operand.vmem [shape: bf16[8,128], index: 1, kind: input, shape index: {}]
  %s2 = inlined_call_operand.hbm [shape: bf16[128,128], index: 2, kind: input, shape index: {}]
  %s3 = inlined_call_operand.vmem [shape: f32[1,128], index: 3, kind: input, shape index: {}]
  %s4 = inlined_call_operand.hbm [shape: bf16[128,128], index: 4, kind: input, shape index: {}]
  %s5 = inlined_call_operand.vmem [shape: f32[1,128], index: 5, kind: input, shape index: {}]
  %s6 = inlined_call_operand.hbm [shape: bf16[128,128], index: 6, kind: input, shape index: {}]
  %s7 = inlined_call_operand.vmem [shape: f32[1,128], index: 7, kind: input, shape index: {}]
  %s8 = inlined_call_operand.hbm [shape: bf16[128,128], index: 8, kind: input, shape index: {}]
  %s9 = inlined_call_operand.vmem [shape: f32[1,128], index: 9, kind: input, shape index: {}]
  %s10 = inlined_call_operand.hbm [shape: f32[8,128], index: 10, kind: output, shape index: {0}]
  %s11 = inlined_call_operand.hbm [shape: f32[8,128], index: 11, kind: output, shape index: {1}]
  %s12 = inlined_call_operand.hbm [shape: f32[8,128], index: 12, kind: output, shape index: {2}]
  %s13 = inlined_call_operand.hbm [shape: f32[8,128], index: 13, kind: output, shape index: {3}]
  %s14 = inlined_call_operand.hbm [shape: f32[8,128], index: 14, kind: output, shape index: {4}]
  %s15 = inlined_call_operand.hbm [shape: f32[8,128], index: 15, kind: output, shape index: {5}]
  %16 = xla_tuple %s10, %s11, %s12, %s13, %s14, %s15
  %s17 = sld [smem:[#allocation0]]
  $region106: #{idcm_nn_forward.5} parent=0
    _
  %s19 = ssub.s32 1, %s17
  %s20 = scalar_select 0, %s19, %s17
  $region1: #{idcm_nn_forward.5} parent=0
    #allocation2 [shape = 'u8[32768]{0}', space=vmem, size = 0x8000, scoped, tag = 'input window, operand 2, single buffered']
    #allocation3 [shape = 's32[1]{0}', space=sflag, size = 0x4, scoped, tag = 'scoped memory for idcm_nn_forward.5']
    #allocation4 [shape = 's32[1]{0}', space=sflag, size = 0x4, scoped, tag = 'scoped memory for idcm_nn_forward.5']
    #allocation5 [shape = 'u8[32768]{0}', space=vmem, size = 0x8000, scoped, tag = 'input window, operand 4, single buffered']
    #allocation6 [shape = 's32[1]{0}', space=sflag, size = 0x4, scoped, tag = 'scoped memory for idcm_nn_forward.5']
    #allocation7 [shape = 'u8[32768]{0}', space=vmem, size = 0x8000, scoped, tag = 'input window, operand 6, single buffered']
    #allocation8 [shape = 'u8[32768]{0}', space=vmem, size = 0x8000, scoped, tag = 'input window, operand 8, single buffered']
    #allocation9 [shape = 's32[1]{0}', space=sflag, size = 0x4, scoped, tag = 'scoped memory for idcm_nn_forward.5']
    #allocation10 [shape = 'u8[4096]{0}', space=vmem, size = 0x1000, scoped, tag = 'output window, operand 0, single buffered']
    #allocation11 [shape = 'u8[4096]{0}', space=vmem, size = 0x1000, scoped, tag = 'output window, operand 1, single buffered']
    #allocation12 [shape = 's32[1]{0}', space=sflag, size = 0x4, scoped, tag = 'scoped memory for idcm_nn_forward.5']
    #allocation13 [shape = 'u8[4096]{0}', space=vmem, size = 0x1000, scoped, tag = 'output window, operand 2, single buffered']
    #allocation14 [shape = 'u8[4096]{0}', space=vmem, size = 0x1000, scoped, tag = 'output window, operand 3, single buffered']
    #allocation15 [shape = 's32[1]{0}', space=sflag, size = 0x4, scoped, tag = 'scoped memory for idcm_nn_forward.5']
    #allocation16 [shape = 'u8[4096]{0}', space=vmem, size = 0x1000, scoped, tag = 'output window, operand 4, single buffered']
    #allocation17 [shape = 'u8[4096]{0}', space=vmem, size = 0x1000, scoped, tag = 'output window, operand 5, single buffered']
    #allocation18 [shape = 's32[1]{0}', space=sflag, size = 0x4, scoped, tag = 'scoped memory for idcm_nn_forward.5']
    %21 = vsyncpa [#allocation3], 0
    %22 = vsyncpa [#allocation6], 0
    %23 = vsyncpa [#allocation9], 0
    %24 = vsyncpa [#allocation4], 0
    %25 = vsyncpa [#allocation12], 0
    %26 = vsyncpa [#allocation15], 0
    %27 = vsyncpa [#allocation18], 0
    // Predicated region
    $region2: #{idcm_nn_forward.5} parent=1 // pred_check
      _
    $region3: #{idcm_nn_forward.5} parent=1 // pred_check_branch
      %29 = sbr.rel (0) target = $region5
    $region4: #{idcm_nn_forward.5} parent=1 // pred_region
      _
    $region5: #{idcm_nn_forward.5} parent=1 // pred_fallthru
      _
    // Predicated region
    $region6: #{idcm_nn_forward.5} parent=1 // pred_check
      _
    $region7: #{idcm_nn_forward.5} parent=1 // pred_check_branch
      %31 = sbr.rel (0) target = $region9
    $region8: #{idcm_nn_forward.5} parent=1 // pred_region
      _
    $region9: #{idcm_nn_forward.5} parent=1 // pred_fallthru
      _
    // Predicated region
    $region10: #{idcm_nn_forward.5} parent=1 // pred_check
      _
    $region11: #{idcm_nn_forward.5} parent=1 // pred_check_branch
      %33 = sbr.rel (0) target = $region13
    $region12: #{idcm_nn_forward.5} parent=1 // pred_region
      %35 = vsyncadd [#allocation3], 0
      %s36 = sshll.u32 %s2, 4
      %s37 = int_to_ptr.hbm [resolvable:$true] %s36
      %s38 = sshll.u32 [#allocation2], 4
      %s39 = int_to_ptr.vmem [resolvable:$true] %s38
      %44 = dma.hbm_to_vmem [thread:$0]  %s37, 1024, %s39, [#allocation3], 64, 64, 4
    $region13: #{idcm_nn_forward.5} parent=1 // pred_fallthru
      _
    // Predicated region
    $region14: #{idcm_nn_forward.5} parent=1 // pred_check
      _
    $region15: #{idcm_nn_forward.5} parent=1 // pred_check_branch
      %46 = sbr.rel (0) target = $region17
    $region16: #{idcm_nn_forward.5} parent=1 // pred_region
      _
    $region17: #{idcm_nn_forward.5} parent=1 // pred_fallthru
      _
    // Predicated region
    $region18: #{idcm_nn_forward.5} parent=1 // pred_check
      _
    $region19: #{idcm_nn_forward.5} parent=1 // pred_check_branch
      %48 = sbr.rel (0) target = $region21
    $region20: #{idcm_nn_forward.5} parent=1 // pred_region
      %50 = vsyncadd [#allocation6], 0
      %s51 = sshll.u32 %s4, 4
      %s52 = int_to_ptr.hbm [resolvable:$true] %s51
      %s53 = sshll.u32 [#allocation5], 4
      %s54 = int_to_ptr.vmem [resolvable:$true] %s53
      %59 = dma.hbm_to_vmem [thread:$0]  %s52, 1024, %s54, [#allocation6], 64, 64, 4
    $region21: #{idcm_nn_forward.5} parent=1 // pred_fallthru
      _
    // Predicated region
    $region22: #{idcm_nn_forward.5} parent=1 // pred_check
      _
    $region23: #{idcm_nn_forward.5} parent=1 // pred_check_branch
      %61 = sbr.rel (0) target = $region25
    $region24: #{idcm_nn_forward.5} parent=1 // pred_region
      _
    $region25: #{idcm_nn_forward.5} parent=1 // pred_fallthru
      _
    // Predicated region
    $region26: #{idcm_nn_forward.5} parent=1 // pred_check
      _
    $region27: #{idcm_nn_forward.5} parent=1 // pred_check_branch
      %63 = sbr.rel (0) target = $region29
    $region28: #{idcm_nn_forward.5} parent=1 // pred_region
      %65 = vsyncadd [#allocation6], 0
      %s66 = sshll.u32 %s6, 4
      %s67 = int_to_ptr.hbm [resolvable:$true] %s66
      %s68 = sshll.u32 [#allocation7], 4
      %s69 = int_to_ptr.vmem [resolvable:$true] %s68
      %74 = dma.hbm_to_vmem [thread:$0]  %s67, 1024, %s69, [#allocation6], 64, 64, 4
    $region29: #{idcm_nn_forward.5} parent=1 // pred_fallthru
      _
    // Predicated region
    $region30: #{idcm_nn_forward.5} parent=1 // pred_check
      _
    $region31: #{idcm_nn_forward.5} parent=1 // pred_check_branch
      %76 = sbr.rel (0) target = $region33
    $region32: #{idcm_nn_forward.5} parent=1 // pred_region
      _
    $region33: #{idcm_nn_forward.5} parent=1 // pred_fallthru
      _
    // Predicated region
    $region34: #{idcm_nn_forward.5} parent=1 // pred_check
      _
    $region35: #{idcm_nn_forward.5} parent=1 // pred_check_branch
      %78 = sbr.rel (0) target = $region37
    $region36: #{idcm_nn_forward.5} parent=1 // pred_region
      %80 = vsyncadd [#allocation9], 0
      %s81 = sshll.u32 %s8, 4
      %s82 = int_to_ptr.hbm [resolvable:$true] %s81
      %s83 = sshll.u32 [#allocation8], 4
      %s84 = int_to_ptr.vmem [resolvable:$true] %s83
      %89 = dma.hbm_to_vmem [thread:$0]  %s82, 1024, %s84, [#allocation9], 64, 64, 4
    $region37: #{idcm_nn_forward.5} parent=1 // pred_fallthru
      _
    // Predicated region
    $region38: #{idcm_nn_forward.5} parent=1 // pred_check
      _
    $region39: #{idcm_nn_forward.5} parent=1 // pred_check_branch
      %91 = sbr.rel (0) target = $region41
    $region40: #{idcm_nn_forward.5} parent=1 // pred_region
      _
    $region41: #{idcm_nn_forward.5} parent=1 // pred_fallthru
      _
    // Predicated region
    $region42: #{idcm_nn_forward.5} parent=1 // pred_check
      _
    $region43: #{idcm_nn_forward.5} parent=1 // pred_check_branch
      %93 = sbr.rel (0) target = $region45
    $region44: #{idcm_nn_forward.5} parent=1 // pred_region
      %95 = dma.done [#allocation3], 1024
    $region45: #{idcm_nn_forward.5} parent=1 // pred_fallthru
      _
    // Predicated region
    $region46: #{idcm_nn_forward.5} parent=1 // pred_check
      _
    $region47: #{idcm_nn_forward.5} parent=1 // pred_check_branch
      %97 = sbr.rel (0) target = $region49
    $region48: #{idcm_nn_forward.5} parent=1 // pred_region
      %99 = dma.done [#allocation6], 1024
    $region49: #{idcm_nn_forward.5} parent=1 // pred_fallthru
      _
    // Predicated region
    $region50: #{idcm_nn_forward.5} parent=1 // pred_check
      _
    $region51: #{idcm_nn_forward.5} parent=1 // pred_check_branch
      %101 = sbr.rel (0) target = $region53
    $region52: #{idcm_nn_forward.5} parent=1 // pred_region
      %103 = dma.done [#allocation6], 1024
    $region53: #{idcm_nn_forward.5} parent=1 // pred_fallthru
      _
    // Predicated region
    $region54: #{idcm_nn_forward.5} parent=1 // pred_check
      _
    $region55: #{idcm_nn_forward.5} parent=1 // pred_check_branch
      %105 = sbr.rel (0) target = $region57
    $region56: #{idcm_nn_forward.5} parent=1 // pred_region
      %107 = dma.done [#allocation9], 1024
    $region57: #{idcm_nn_forward.5} parent=1 // pred_fallthru
      _
    %v108 = vld [vmem:[%s0] sm:$0xf]
    %v109 = vld [vmem:[#allocation2] sm:$0xf]
    %v110 = vld [vmem:[#allocation2 + $0x4] sm:$0xf]
    %v111 = vld [vmem:[#allocation2 + $0x8] sm:$0xf]
    %v112 = vld [vmem:[#allocation2 + $0xc] sm:$0xf]
    %v113 = vld [vmem:[#allocation2 + $0x10] sm:$0xf]
    %v114 = vld [vmem:[#allocation2 + $0x14] sm:$0xf]
    %v115 = vld [vmem:[#allocation2 + $0x18] sm:$0xf]
    %v116 = vld [vmem:[#allocation2 + $0x1c] sm:$0xf]
    %v117 = vld [vmem:[#allocation2 + $0x20] sm:$0xf]
    %v118 = vld [vmem:[#allocation2 + $0x24] sm:$0xf]
    %v119 = vld [vmem:[#allocation2 + $0x28] sm:$0xf]
    %v120 = vld [vmem:[#allocation2 + $0x2c] sm:$0xf]
    %v121 = vld [vmem:[#allocation2 + $0x30] sm:$0xf]
    %v122 = vld [vmem:[#allocation2 + $0x34] sm:$0xf]
    %v123 = vld [vmem:[#allocation2 + $0x38] sm:$0xf]
    %v124 = vld [vmem:[#allocation2 + $0x3c] sm:$0xf]
    %v125 = vld [vmem:[%s3] sm:$0x1]
    %v127 = vperm.slane %v125, 0
    %v145 = vunpack.c.l.b16 %v109
    %v146 = vunpack.c.l.b16 %v110
    %v147 = vunpack.c.l.b16 %v111
    %v148 = vunpack.c.l.b16 %v112
    %v149 = vunpack.c.l.b16 %v113
    %v150 = vunpack.c.l.b16 %v114
    %v151 = vunpack.c.l.b16 %v115
    %v152 = vunpack.c.l.b16 %v116
    %v153 = vunpack.c.l.b16 %v117
    %v154 = vunpack.c.l.b16 %v118
    %v155 = vunpack.c.l.b16 %v119
    %v156 = vunpack.c.l.b16 %v120
    %v157 = vunpack.c.l.b16 %v121
    %v158 = vunpack.c.l.b16 %v122
    %v159 = vunpack.c.l.b16 %v123
    %v160 = vunpack.c.l.b16 %v124
    %v161 = vpack.c.b16 %v146, %v145
    %v162 = vpack.c.b16 %v148, %v147
    %v163 = vpack.c.b16 %v150, %v149
    %v164 = vpack.c.b16 %v152, %v151
    %v165 = vpack.c.b16 %v154, %v153
    %v166 = vpack.c.b16 %v156, %v155
    %v167 = vpack.c.b16 %v158, %v157
    %v168 = vpack.c.b16 %v160, %v159
    %177 = vmatpush.bf16.msra.mxu0 %v168
    %178 = vmatpush.bf16.msra.mxu0 %v167
    %179 = vmatpush.bf16.msra.mxu0 %v166
    %180 = vmatpush.bf16.msra.mxu0 %v165
    %181 = vmatpush.bf16.msra.mxu0 %v164
    %182 = vmatpush.bf16.msra.mxu0 %v163
    %183 = vmatpush.bf16.msra.mxu0 %v162
    %184 = vmatpush.bf16.msra.mxu0 %v161
    %185 = vmatmul.bf16.gmra.mxu0 %v108
    %v186 = vpop.f32.mrf.mxu0
    %v187 = vadd.f32 %v127, %v186
    %v188 = vpop.f32.mrf.mxu0
    %189 = vdwg.mxu0
    %v190 = vld [vmem:[%s1] sm:$0xf]
    %191 = vmatpush.bf16.msra.mxu0 %v168
    %192 = vmatpush.bf16.msra.mxu0 %v167
    %193 = vmatpush.bf16.msra.mxu0 %v166
    %194 = vmatpush.bf16.msra.mxu0 %v165
    %195 = vmatpush.bf16.msra.mxu0 %v164
    %196 = vmatpush.bf16.msra.mxu0 %v163
    %197 = vmatpush.bf16.msra.mxu0 %v162
    %198 = vmatpush.bf16.msra.mxu0 %v161
    %199 = vmatmul.bf16.gmra.mxu0 %v190
    %v200 = vpop.f32.mrf.mxu0
    %v201 = vadd.f32 %v127, %v200
    %v202 = vpop.f32.mrf.mxu0
    %203 = vdwg.mxu0
    %204 = vst [vmem:[#allocation10] sm:$0xff] %v187
    %205 = vst [vmem:[#allocation11] sm:$0xff] %v201
    %v206 = vpack.c.bf16 %v187, %v187
    %v207 = vpack.c.bf16 %v201, %v201
    %v208 = vld [vmem:[#allocation5] sm:$0xf]
    %v209 = vld [vmem:[#allocation5 + $0x4] sm:$0xf]
    %v210 = vld [vmem:[#allocation5 + $0x8] sm:$0xf]
    %v211 = vld [vmem:[#allocation5 + $0xc] sm:$0xf]
    %v212 = vld [vmem:[#allocation5 + $0x10] sm:$0xf]
    %v213 = vld [vmem:[#allocation5 + $0x14] sm:$0xf]
    %v214 = vld [vmem:[#allocation5 + $0x18] sm:$0xf]
    %v215 = vld [vmem:[#allocation5 + $0x1c] sm:$0xf]
    %v216 = vld [vmem:[#allocation5 + $0x20] sm:$0xf]
    %v217 = vld [vmem:[#allocation5 + $0x24] sm:$0xf]
    %v218 = vld [vmem:[#allocation5 + $0x28] sm:$0xf]
    %v219 = vld [vmem:[#allocation5 + $0x2c] sm:$0xf]
    %v220 = vld [vmem:[#allocation5 + $0x30] sm:$0xf]
    %v221 = vld [vmem:[#allocation5 + $0x34] sm:$0xf]
    %v222 = vld [vmem:[#allocation5 + $0x38] sm:$0xf]
    %v223 = vld [vmem:[#allocation5 + $0x3c] sm:$0xf]
    %v224 = vld [vmem:[%s5] sm:$0x1]
    %v226 = vperm.slane %v224, 0
    %v244 = vunpack.c.l.b16 %v208
    %v245 = vunpack.c.l.b16 %v209
    %v246 = vunpack.c.l.b16 %v210
    %v247 = vunpack.c.l.b16 %v211
    %v248 = vunpack.c.l.b16 %v212
    %v249 = vunpack.c.l.b16 %v213
    %v250 = vunpack.c.l.b16 %v214
    %v251 = vunpack.c.l.b16 %v215
    %v252 = vunpack.c.l.b16 %v216
    %v253 = vunpack.c.l.b16 %v217
    %v254 = vunpack.c.l.b16 %v218
    %v255 = vunpack.c.l.b16 %v219
    %v256 = vunpack.c.l.b16 %v220
    %v257 = vunpack.c.l.b16 %v221
    %v258 = vunpack.c.l.b16 %v222
    %v259 = vunpack.c.l.b16 %v223
    %v260 = vpack.c.b16 %v245, %v244
    %v261 = vpack.c.b16 %v247, %v246
    %v262 = vpack.c.b16 %v249, %v248
    %v263 = vpack.c.b16 %v251, %v250
    %v264 = vpack.c.b16 %v253, %v252
    %v265 = vpack.c.b16 %v255, %v254
    %v266 = vpack.c.b16 %v257, %v256
    %v267 = vpack.c.b16 %v259, %v258
    %276 = vmatpush.bf16.msra.mxu0 %v267
    %277 = vmatpush.bf16.msra.mxu0 %v266
    %278 = vmatpush.bf16.msra.mxu0 %v265
    %279 = vmatpush.bf16.msra.mxu0 %v264
    %280 = vmatpush.bf16.msra.mxu0 %v263
    %281 = vmatpush.bf16.msra.mxu0 %v262
    %282 = vmatpush.bf16.msra.mxu0 %v261
    %283 = vmatpush.bf16.msra.mxu0 %v260
    %284 = vmatmul.bf16.gmra.mxu0 %v206
    %v285 = vpop.f32.mrf.mxu0
    %v286 = vadd.f32 %v226, %v285
    %v287 = vpop.f32.mrf.mxu0
    %288 = vdwg.mxu0
    %289 = vst [vmem:[#allocation13] sm:$0xff] %v286
    %v290 = vld [vmem:[#allocation5] sm:$0xf]
    %v291 = vld [vmem:[#allocation5 + $0x4] sm:$0xf]
    %v292 = vld [vmem:[#allocation5 + $0x8] sm:$0xf]
    %v293 = vld [vmem:[#allocation5 + $0xc] sm:$0xf]
    %v294 = vld [vmem:[#allocation5 + $0x10] sm:$0xf]
    %v295 = vld [vmem:[#allocation5 + $0x14] sm:$0xf]
    %v296 = vld [vmem:[#allocation5 + $0x18] sm:$0xf]
    %v297 = vld [vmem:[#allocation5 + $0x1c] sm:$0xf]
    %v298 = vld [vmem:[#allocation5 + $0x20] sm:$0xf]
    %v299 = vld [vmem:[#allocation5 + $0x24] sm:$0xf]
    %v300 = vld [vmem:[#allocation5 + $0x28] sm:$0xf]
    %v301 = vld [vmem:[#allocation5 + $0x2c] sm:$0xf]
    %v302 = vld [vmem:[#allocation5 + $0x30] sm:$0xf]
    %v303 = vld [vmem:[#allocation5 + $0x34] sm:$0xf]
    %v304 = vld [vmem:[#allocation5 + $0x38] sm:$0xf]
    %v305 = vld [vmem:[#allocation5 + $0x3c] sm:$0xf]
    %v306 = vld [vmem:[%s5] sm:$0x1]
    %v308 = vperm.slane %v306, 0
    %v326 = vunpack.c.l.b16 %v290
    %v327 = vunpack.c.l.b16 %v291
    %v328 = vunpack.c.l.b16 %v292
    %v329 = vunpack.c.l.b16 %v293
    %v330 = vunpack.c.l.b16 %v294
    %v331 = vunpack.c.l.b16 %v295
    %v332 = vunpack.c.l.b16 %v296
    %v333 = vunpack.c.l.b16 %v297
    %v334 = vunpack.c.l.b16 %v298
    %v335 = vunpack.c.l.b16 %v299
    %v336 = vunpack.c.l.b16 %v300
    %v337 = vunpack.c.l.b16 %v301
    %v338 = vunpack.c.l.b16 %v302
    %v339 = vunpack.c.l.b16 %v303
    %v340 = vunpack.c.l.b16 %v304
    %v341 = vunpack.c.l.b16 %v305
    %v342 = vpack.c.b16 %v327, %v326
    %v343 = vpack.c.b16 %v329, %v328
    %v344 = vpack.c.b16 %v331, %v330
    %v345 = vpack.c.b16 %v333, %v332
    %v346 = vpack.c.b16 %v335, %v334
    %v347 = vpack.c.b16 %v337, %v336
    %v348 = vpack.c.b16 %v339, %v338
    %v349 = vpack.c.b16 %v341, %v340
    %358 = vmatpush.bf16.msra.mxu0 %v349
    %359 = vmatpush.bf16.msra.mxu0 %v348
    %360 = vmatpush.bf16.msra.mxu0 %v347
    %361 = vmatpush.bf16.msra.mxu0 %v346
    %362 = vmatpush.bf16.msra.mxu0 %v345
    %363 = vmatpush.bf16.msra.mxu0 %v344
    %364 = vmatpush.bf16.msra.mxu0 %v343
    %365 = vmatpush.bf16.msra.mxu0 %v342
    %366 = vmatmul.bf16.gmra.mxu0 %v207
    %v367 = vpop.f32.mrf.mxu0
    %v368 = vadd.f32 %v308, %v367
    %v369 = vpop.f32.mrf.mxu0
    %370 = vdwg.mxu0
    %371 = vst [vmem:[#allocation14] sm:$0xff] %v368
    %v372 = vld [vmem:[#allocation7] sm:$0xf]
    %v373 = vld [vmem:[#allocation7 + $0x4] sm:$0xf]
    %v374 = vld [vmem:[#allocation7 + $0x8] sm:$0xf]
    %v375 = vld [vmem:[#allocation7 + $0xc] sm:$0xf]
    %v376 = vld [vmem:[#allocation7 + $0x10] sm:$0xf]
    %v377 = vld [vmem:[#allocation7 + $0x14] sm:$0xf]
    %v378 = vld [vmem:[#allocation7 + $0x18] sm:$0xf]
    %v379 = vld [vmem:[#allocation7 + $0x1c] sm:$0xf]
    %v380 = vld [vmem:[#allocation7 + $0x20] sm:$0xf]
    %v381 = vld [vmem:[#allocation7 + $0x24] sm:$0xf]
    %v382 = vld [vmem:[#allocation7 + $0x28] sm:$0xf]
    %v383 = vld [vmem:[#allocation7 + $0x2c] sm:$0xf]
    %v384 = vld [vmem:[#allocation7 + $0x30] sm:$0xf]
    %v385 = vld [vmem:[#allocation7 + $0x34] sm:$0xf]
    %v386 = vld [vmem:[#allocation7 + $0x38] sm:$0xf]
    %v387 = vld [vmem:[#allocation7 + $0x3c] sm:$0xf]
    %v388 = vld [vmem:[%s7] sm:$0x1]
    %v390 = vperm.slane %v388, 0
    %v408 = vunpack.c.l.b16 %v372
    %v409 = vunpack.c.l.b16 %v373
    %v410 = vunpack.c.l.b16 %v374
    %v411 = vunpack.c.l.b16 %v375
    %v412 = vunpack.c.l.b16 %v376
    %v413 = vunpack.c.l.b16 %v377
    %v414 = vunpack.c.l.b16 %v378
    %v415 = vunpack.c.l.b16 %v379
    %v416 = vunpack.c.l.b16 %v380
    %v417 = vunpack.c.l.b16 %v381
    %v418 = vunpack.c.l.b16 %v382
    %v419 = vunpack.c.l.b16 %v383
    %v420 = vunpack.c.l.b16 %v384
    %v421 = vunpack.c.l.b16 %v385
    %v422 = vunpack.c.l.b16 %v386
    %v423 = vunpack.c.l.b16 %v387
    %v424 = vpack.c.b16 %v409, %v408
    %v425 = vpack.c.b16 %v411, %v410
    %v426 = vpack.c.b16 %v413, %v412
    %v427 = vpack.c.b16 %v415, %v414
    %v428 = vpack.c.b16 %v417, %v416
    %v429 = vpack.c.b16 %v419, %v418
    %v430 = vpack.c.b16 %v421, %v420
    %v431 = vpack.c.b16 %v423, %v422
    %440 = vmatpush.bf16.msra.mxu0 %v431
    %441 = vmatpush.bf16.msra.mxu0 %v430
    %442 = vmatpush.bf16.msra.mxu0 %v429
    %443 = vmatpush.bf16.msra.mxu0 %v428
    %444 = vmatpush.bf16.msra.mxu0 %v427
    %445 = vmatpush.bf16.msra.mxu0 %v426
    %446 = vmatpush.bf16.msra.mxu0 %v425
    %447 = vmatpush.bf16.msra.mxu0 %v424
    %448 = vmatmul.bf16.gmra.mxu0 %v206
    %v449 = vpop.f32.mrf.mxu0
    %v450 = vadd.f32 %v390, %v449
    %v451 = vpop.f32.mrf.mxu0
    %452 = vdwg.mxu0
    %v453 = vmax.f32 %v450, 0.0
    %454 = vst [vmem:[#allocation16] sm:$0xff] %v453
    %v455 = vld [vmem:[#allocation8] sm:$0xf]
    %v456 = vld [vmem:[#allocation8 + $0x4] sm:$0xf]
    %v457 = vld [vmem:[#allocation8 + $0x8] sm:$0xf]
    %v458 = vld [vmem:[#allocation8 + $0xc] sm:$0xf]
    %v459 = vld [vmem:[#allocation8 + $0x10] sm:$0xf]
    %v460 = vld [vmem:[#allocation8 + $0x14] sm:$0xf]
    %v461 = vld [vmem:[#allocation8 + $0x18] sm:$0xf]
    %v462 = vld [vmem:[#allocation8 + $0x1c] sm:$0xf]
    %v463 = vld [vmem:[#allocation8 + $0x20] sm:$0xf]
    %v464 = vld [vmem:[#allocation8 + $0x24] sm:$0xf]
    %v465 = vld [vmem:[#allocation8 + $0x28] sm:$0xf]
    %v466 = vld [vmem:[#allocation8 + $0x2c] sm:$0xf]
    %v467 = vld [vmem:[#allocation8 + $0x30] sm:$0xf]
    %v468 = vld [vmem:[#allocation8 + $0x34] sm:$0xf]
    %v469 = vld [vmem:[#allocation8 + $0x38] sm:$0xf]
    %v470 = vld [vmem:[#allocation8 + $0x3c] sm:$0xf]
    %v471 = vld [vmem:[%s9] sm:$0x1]
    %v473 = vperm.slane %v471, 0
    %v491 = vunpack.c.l.b16 %v455
    %v492 = vunpack.c.l.b16 %v456
    %v493 = vunpack.c.l.b16 %v457
    %v494 = vunpack.c.l.b16 %v458
    %v495 = vunpack.c.l.b16 %v459
    %v496 = vunpack.c.l.b16 %v460
    %v497 = vunpack.c.l.b16 %v461
    %v498 = vunpack.c.l.b16 %v462
    %v499 = vunpack.c.l.b16 %v463
    %v500 = vunpack.c.l.b16 %v464
    %v501 = vunpack.c.l.b16 %v465
    %v502 = vunpack.c.l.b16 %v466
    %v503 = vunpack.c.l.b16 %v467
    %v504 = vunpack.c.l.b16 %v468
    %v505 = vunpack.c.l.b16 %v469
    %v506 = vunpack.c.l.b16 %v470
    %v507 = vpack.c.b16 %v492, %v491
    %v508 = vpack.c.b16 %v494, %v493
    %v509 = vpack.c.b16 %v496, %v495
    %v510 = vpack.c.b16 %v498, %v497
    %v511 = vpack.c.b16 %v500, %v499
    %v512 = vpack.c.b16 %v502, %v501
    %v513 = vpack.c.b16 %v504, %v503
    %v514 = vpack.c.b16 %v506, %v505
    %523 = vmatpush.bf16.msra.mxu0 %v514
    %524 = vmatpush.bf16.msra.mxu0 %v513
    %525 = vmatpush.bf16.msra.mxu0 %v512
    %526 = vmatpush.bf16.msra.mxu0 %v511
    %527 = vmatpush.bf16.msra.mxu0 %v510
    %528 = vmatpush.bf16.msra.mxu0 %v509
    %529 = vmatpush.bf16.msra.mxu0 %v508
    %530 = vmatpush.bf16.msra.mxu0 %v507
    %531 = vmatmul.bf16.gmra.mxu0 %v207
    %v532 = vpop.f32.mrf.mxu0
    %v533 = vadd.f32 %v473, %v532
    %v534 = vpop.f32.mrf.mxu0
    %535 = vdwg.mxu0
    %v536 = vmax.f32 %v533, 0.0
    %537 = vst [vmem:[#allocation17] sm:$0xff] %v536
    // Predicated region
    $region58: #{idcm_nn_forward.5} parent=1 // pred_check
      _
    $region59: #{idcm_nn_forward.5} parent=1 // pred_check_branch
      %539 = sbr.rel (0) target = $region61
    $region60: #{idcm_nn_forward.5} parent=1 // pred_region
      %541 = vsyncadd [#allocation4], 0
      %s543 = sshll.u32 [#allocation10], 4
      %s544 = int_to_ptr.vmem [resolvable:$true] %s543
      %s545 = sshll.u32 %s10, 4
      %s546 = int_to_ptr.hbm [resolvable:$true] %s545
      %548 = dma.vmem_to_hbm [thread:$0]  %s544, 128, %s546, [#allocation4]
    $region61: #{idcm_nn_forward.5} parent=1 // pred_fallthru
      _
    // Predicated region
    $region62: #{idcm_nn_forward.5} parent=1 // pred_check
      _
    $region63: #{idcm_nn_forward.5} parent=1 // pred_check_branch
      %550 = sbr.rel (0) target = $region65
    $region64: #{idcm_nn_forward.5} parent=1 // pred_region
      %552 = vsyncadd [#allocation12], 0
      %s554 = sshll.u32 [#allocation11], 4
      %s555 = int_to_ptr.vmem [resolvable:$true] %s554
      %s556 = sshll.u32 %s11, 4
      %s557 = int_to_ptr.hbm [resolvable:$true] %s556
      %559 = dma.vmem_to_hbm [thread:$0]  %s555, 128, %s557, [#allocation12]
    $region65: #{idcm_nn_forward.5} parent=1 // pred_fallthru
      _
    // Predicated region
    $region66: #{idcm_nn_forward.5} parent=1 // pred_check
      _
    $region67: #{idcm_nn_forward.5} parent=1 // pred_check_branch
      %561 = sbr.rel (0) target = $region69
    $region68: #{idcm_nn_forward.5} parent=1 // pred_region
      %563 = vsyncadd [#allocation12], 0
      %s565 = sshll.u32 [#allocation13], 4
      %s566 = int_to_ptr.vmem [resolvable:$true] %s565
      %s567 = sshll.u32 %s12, 4
      %s568 = int_to_ptr.hbm [resolvable:$true] %s567
      %570 = dma.vmem_to_hbm [thread:$0]  %s566, 128, %s568, [#allocation12]
    $region69: #{idcm_nn_forward.5} parent=1 // pred_fallthru
      _
    // Predicated region
    $region70: #{idcm_nn_forward.5} parent=1 // pred_check
      _
    $region71: #{idcm_nn_forward.5} parent=1 // pred_check_branch
      %572 = sbr.rel (0) target = $region73
    $region72: #{idcm_nn_forward.5} parent=1 // pred_region
      %574 = vsyncadd [#allocation15], 0
      %s576 = sshll.u32 [#allocation14], 4
      %s577 = int_to_ptr.vmem [resolvable:$true] %s576
      %s578 = sshll.u32 %s13, 4
      %s579 = int_to_ptr.hbm [resolvable:$true] %s578
      %581 = dma.vmem_to_hbm [thread:$0]  %s577, 128, %s579, [#allocation15]
    $region73: #{idcm_nn_forward.5} parent=1 // pred_fallthru
      _
    // Predicated region
    $region74: #{idcm_nn_forward.5} parent=1 // pred_check
      _
    $region75: #{idcm_nn_forward.5} parent=1 // pred_check_branch
      %583 = sbr.rel (0) target = $region77
    $region76: #{idcm_nn_forward.5} parent=1 // pred_region
      %585 = vsyncadd [#allocation15], 0
      %s587 = sshll.u32 [#allocation16], 4
      %s588 = int_to_ptr.vmem [resolvable:$true] %s587
      %s589 = sshll.u32 %s14, 4
      %s590 = int_to_ptr.hbm [resolvable:$true] %s589
      %592 = dma.vmem_to_hbm [thread:$0]  %s588, 128, %s590, [#allocation15]
    $region77: #{idcm_nn_forward.5} parent=1 // pred_fallthru
      _
    // Predicated region
    $region78: #{idcm_nn_forward.5} parent=1 // pred_check
      _
    $region79: #{idcm_nn_forward.5} parent=1 // pred_check_branch
      %594 = sbr.rel (0) target = $region81
    $region80: #{idcm_nn_forward.5} parent=1 // pred_region
      %596 = vsyncadd [#allocation18], 0
      %s598 = sshll.u32 [#allocation17], 4
      %s599 = int_to_ptr.vmem [resolvable:$true] %s598
      %s600 = sshll.u32 %s15, 4
      %s601 = int_to_ptr.hbm [resolvable:$true] %s600
      %603 = dma.vmem_to_hbm [thread:$0]  %s599, 128, %s601, [#allocation18]
    $region81: #{idcm_nn_forward.5} parent=1 // pred_fallthru
      _
    // Predicated region
    $region82: #{idcm_nn_forward.5} parent=1 // pred_check
      _
    $region83: #{idcm_nn_forward.5} parent=1 // pred_check_branch
      %605 = sbr.rel (0) target = $region85
    $region84: #{idcm_nn_forward.5} parent=1 // pred_region
      %607 = dma.done [#allocation4], 128
    $region85: #{idcm_nn_forward.5} parent=1 // pred_fallthru
      _
    // Predicated region
    $region86: #{idcm_nn_forward.5} parent=1 // pred_check
      _
    $region87: #{idcm_nn_forward.5} parent=1 // pred_check_branch
      %609 = sbr.rel (0) target = $region89
    $region88: #{idcm_nn_forward.5} parent=1 // pred_region
      %611 = dma.done [#allocation12], 128
    $region89: #{idcm_nn_forward.5} parent=1 // pred_fallthru
      _
    // Predicated region
    $region90: #{idcm_nn_forward.5} parent=1 // pred_check
      _
    $region91: #{idcm_nn_forward.5} parent=1 // pred_check_branch
      %613 = sbr.rel (0) target = $region93
    $region92: #{idcm_nn_forward.5} parent=1 // pred_region
      %615 = dma.done [#allocation12], 128
    $region93: #{idcm_nn_forward.5} parent=1 // pred_fallthru
      _
    // Predicated region
    $region94: #{idcm_nn_forward.5} parent=1 // pred_check
      _
    $region95: #{idcm_nn_forward.5} parent=1 // pred_check_branch
      %617 = sbr.rel (0) target = $region97
    $region96: #{idcm_nn_forward.5} parent=1 // pred_region
      %619 = dma.done [#allocation15], 128
    $region97: #{idcm_nn_forward.5} parent=1 // pred_fallthru
      _
    // Predicated region
    $region98: #{idcm_nn_forward.5} parent=1 // pred_check
      _
    $region99: #{idcm_nn_forward.5} parent=1 // pred_check_branch
      %621 = sbr.rel (0) target = $region101
    $region100: #{idcm_nn_forward.5} parent=1 // pred_region
      %623 = dma.done [#allocation15], 128
    $region101: #{idcm_nn_forward.5} parent=1 // pred_fallthru
      _
    // Predicated region
    $region102: #{idcm_nn_forward.5} parent=1 // pred_check
      _
    $region103: #{idcm_nn_forward.5} parent=1 // pred_check_branch
      %625 = sbr.rel (0) target = $region105
    $region104: #{idcm_nn_forward.5} parent=1 // pred_region
      %627 = dma.done [#allocation18], 128
    $region105: #{idcm_nn_forward.5} parent=1 // pred_fallthru
      _
    %628 = vsyncpa [#allocation3], 1
    %629 = vsyncpa [#allocation6], 1
    %630 = vsyncpa [#allocation9], 1
    %631 = vsyncpa [#allocation4], 1
    %632 = vsyncpa [#allocation12], 1
    %633 = vsyncpa [#allocation15], 1
    %634 = vsyncpa [#allocation18], 1

</llo_original>
